<compile_context>
chip_gen: v7x
topology: tpu7x:2x2x1
jax: 0.10.0
libtpu: 0.0.40
codegen_flags: <defaults>
</compile_context>

<pallas_src>
import jax
import jax.numpy as jnp
from jax import lax
from jax.experimental import pallas as pl
from jax.experimental.pallas import tpu as pltpu

N_OUT = 5    # linear out_features (also the broadcast rows of x)
F_IN = 4     # linear in_features
TOPK = 3
LANE = 128   # lane width
CH = 16      # sublane rows processed per in-kernel chunk (multiple of 8)


def _model_kernel(x_ref, w_ref, g_ref, vals_ref, idx_ref):
    # x_ref:    (N_OUT*F_IN, TS, 128) VMEM f32  -- batch on (sublane, lane).
    # w_ref:    (N_OUT, F_IN)  SMEM f32 (scalar reads).
    # g_ref:    (N_OUT, N_OUT) SMEM f32, G = W @ W^T + b (batch independent).
    # vals_ref: (TOPK, TS, 128) f32,  idx_ref: (TOPK, TS, 128) i32.
    ts = x_ref.shape[1]
    n_ch = ts // CH  # static

    # Hoist all SMEM scalar reads out of the loops (read each value exactly once).
    wv = [[w_ref[o, f] for f in range(F_IN)] for o in range(N_OUT)]
    gv = [[g_ref[n, o] for o in range(N_OUT)] for n in range(N_OUT)]

    def chunk(j, carry):
        r0 = pl.multiple_of(j * CH, CH)
        rows = pl.ds(r0, CH)

        # s[n] = sum_o relu( sum_f x[n,f] * W[o,f] + G[n,o] )
        # fully unrolled scalar*plane FMAs on the VPU, full (CH,128) vreg tiles.
        s_rows = []
        for n in range(N_OUT):
            x_nf = [x_ref[n * F_IN + f, rows, :] for f in range(F_IN)]  # 4 x (CH,128)
            s_n = None
            for o in range(N_OUT):
                acc = x_nf[0] * wv[o][0]
                for f in range(1, F_IN):
                    acc = acc + x_nf[f] * wv[o][f]
                r = jnp.maximum(acc + gv[n][o], 0.0)          # ReLU
                s_n = r if s_n is None else s_n + r
            s_rows.append(s_n)                                # (CH, 128)

        # top-3 of 5 per element: stable unrolled insertion (strict '>' keeps the
        # earlier index on ties, matching torch.topk / lax.top_k).  Pure VPU work.
        shape = s_rows[0].shape
        neg_inf = jnp.full(shape, -jnp.inf, jnp.float32)
        zero_i = jnp.zeros(shape, jnp.int32)
        v1, v2, v3 = neg_inf, neg_inf, neg_inf
        i1, i2, i3 = zero_i, zero_i, zero_i
        for n in range(N_OUT):
            cand = s_rows[n]
            ci = jnp.full(shape, n, jnp.int32)
            c1 = cand > v1
            c2 = cand > v2
            c3 = cand > v3
            nv1 = jnp.where(c1, cand, v1)
            ni1 = jnp.where(c1, ci, i1)
            nv2 = jnp.where(c1, v1, jnp.where(c2, cand, v2))
            ni2 = jnp.where(c1, i1, jnp.where(c2, ci, i2))
            nv3 = jnp.where(c2, v2, jnp.where(c3, cand, v3))  # c1 => c2 (sorted invariant)
            ni3 = jnp.where(c2, i2, jnp.where(c3, ci, i3))
            v1, v2, v3 = nv1, nv2, nv3
            i1, i2, i3 = ni1, ni2, ni3

        # Direct full-tile plane stores (lane-dense, no concatenate / relayout).
        vals_ref[0, rows, :] = v1
        vals_ref[1, rows, :] = v2
        vals_ref[2, rows, :] = v3
        idx_ref[0, rows, :] = i1
        idx_ref[1, rows, :] = i2
        idx_ref[2, rows, :] = i3
        return carry

    lax.fori_loop(0, n_ch, chunk, 0)


def model_forward(x, w, b, *, max_ts=256):
    """x: (B, 5, 4), w: (5, 4), b: (5,) -> (values (B, 3) f32, indices (B, 3) i32)."""
    B = x.shape[0]
    x = x.astype(jnp.float32)
    w = w.astype(jnp.float32)
    b = b.astype(jnp.float32)

    # Tile sizing: batch -> (sublane rows, 128 lanes); rows per grid step = TS (mult of CH).
    rows_needed = pl.cdiv(B, LANE)
    rows_r = CH * pl.cdiv(rows_needed, CH)
    if rows_r >= 2 * CH:
        # Keep at least 2 grid blocks when there is enough work (v7x has 2 TensorCores).
        ts_cap = max(CH, CH * ((rows_r // 2) // CH))
    else:
        ts_cap = rows_r
    TS = min(max_ts, ts_cap)                       # multiple of CH
    n_blocks = pl.cdiv(rows_r, TS)
    rows_p = n_blocks * TS
    Bp = rows_p * LANE

    # Batch-independent term: (x + W) W^T + b == x W^T + (W W^T + b).
    g = jnp.dot(w, w.T) + b[None, :]               # (5, 5)

    # TODO(synk): this pad+transpose is one extra XLA pass over x in HBM; a producer
    # that hands x already lane-major ((5, 4, B)) would remove it entirely.
    x_p = jnp.pad(x, ((0, Bp - B), (0, 0), (0, 0)))
    x_flat = jnp.transpose(x_p, (1, 2, 0)).reshape(N_OUT * F_IN, rows_p, LANE)

    grid_spec = pltpu.PrefetchScalarGridSpec(
        num_scalar_prefetch=0,
        grid=(n_blocks,),
        in_specs=[
            pl.BlockSpec((N_OUT * F_IN, TS, LANE), lambda i: (0, i, 0)),   # x tile
            pl.BlockSpec(memory_space=pltpu.MemorySpace.SMEM),             # W scalars
            pl.BlockSpec(memory_space=pltpu.MemorySpace.SMEM),             # G scalars
        ],
        out_specs=[
            pl.BlockSpec((TOPK, TS, LANE), lambda i: (0, i, 0)),
            pl.BlockSpec((TOPK, TS, LANE), lambda i: (0, i, 0)),
        ],
    )
    vals_t, idx_t = pl.pallas_call(
        _model_kernel,
        out_shape=(
            jax.ShapeDtypeStruct((TOPK, rows_p, LANE), jnp.float32),
            jax.ShapeDtypeStruct((TOPK, rows_p, LANE), jnp.int32),
        ),
        grid_spec=grid_spec,
        compiler_params=pltpu.CompilerParams(
            dimension_semantics=("parallel",),
            vmem_limit_bytes=32 * 1024 * 1024,
        ),
    )(x_flat, w, g)

    # Strip batch padding and return torch-style (B, TOPK) layout.
    vals = vals_t.reshape(TOPK, Bp)[:, :B].T
    idxs = idx_t.reshape(TOPK, Bp)[:, :B].T
    return vals, idxs


def model_forward_ref(x, w, b):
    z = jnp.einsum("bnf,of->bno", x + w, w) + b
    s = jnp.sum(jax.nn.relu(z), axis=-1)
    return lax.top_k(s, TOPK)


if __name__ == "__main__":
    key = jax.random.PRNGKey(0)
    kx, kw, kb, kp, kx2 = jax.random.split(key, 5)

    # Parameters (deterministic synthetic init; shapes from nn.Linear(4, 5)).
    w = jax.random.normal(kw, (N_OUT, F_IN), dtype=jnp.float32) * 0.5
    b = jax.random.normal(kb, (N_OUT,), dtype=jnp.float32) * 0.1
    # self.param = nn.Parameter(torch.rand(3, 4)) is unused in forward; kept for fidelity.
    _param = jax.random.uniform(kp, (3, 4), dtype=jnp.float32)

    # Small input: broadcasts against weight (5, 4) and feeds Linear(4, 5).
    B = 2
    x = jax.random.normal(kx, (B, N_OUT, F_IN), dtype=jnp.float32)

    vals, idxs = model_forward(x, w, b)
    jax.block_until_ready((vals, idxs))

    ref_vals, ref_idxs = model_forward_ref(x, w, b)
    assert vals.shape == (B, TOPK) and idxs.shape == (B, TOPK)
    assert jnp.allclose(vals, ref_vals, atol=1e-5, rtol=1e-5), (vals, ref_vals)
    assert jnp.array_equal(idxs, ref_idxs), (idxs, ref_idxs)

    # Larger batch: exercises batch padding, the in-kernel chunk loop and a
    # multi-block (multi-core-capable) grid.
    B2 = 5000
    x2 = jax.random.normal(kx2, (B2, N_OUT, F_IN), dtype=jnp.float32)
    vals2, idxs2 = model_forward(x2, w, b)
    jax.block_until_ready((vals2, idxs2))
    ref_vals2, ref_idxs2 = model_forward_ref(x2, w, b)
    assert jnp.allclose(vals2, ref_vals2, atol=1e-5, rtol=1e-5)
    assert jnp.array_equal(idxs2, ref_idxs2)

    print("KERNEL_OK")
</pallas_src>

<mosaic_0001>
module attributes {stable_mosaic.version = 11 : i64} {
  func.func @_model_kernel(%arg0: i32, %arg1: memref<20x16x128xf32, #tpu.memory_space<vmem>>, %arg2: memref<5x4xf32, #tpu.memory_space<smem>>, %arg3: memref<5x5xf32, #tpu.memory_space<smem>>, %arg4: memref<3x16x128xf32, #tpu.memory_space<vmem>>, %arg5: memref<3x16x128xi32, #tpu.memory_space<vmem>>) attributes {dimension_semantics = [#tpu.dimension_semantics<parallel>], iteration_bounds = array<i64: 1>, scalar_prefetch = 0 : i64, scratch_operands = 0 : i64, tpu.core_type = #tpu.core_type<tc>, window_params = [{transform_indices = @transform_0, window_bounds = array<i64: 20, 16, 128>}, {transform_indices = @transform_1, window_bounds = array<i64: 5, 4>}, {transform_indices = @transform_2, window_bounds = array<i64: 5, 5>}, {transform_indices = @transform_3, window_bounds = array<i64: 3, 16, 128>}, {transform_indices = @transform_4, window_bounds = array<i64: 3, 16, 128>}]} {
    %c0 = arith.constant 0 : index
    %c0_0 = arith.constant 0 : index
    %0 = memref.load %arg2[%c0, %c0_0] : memref<5x4xf32, #tpu.memory_space<smem>>
    %c0_1 = arith.constant 0 : index
    %c1 = arith.constant 1 : index
    %1 = memref.load %arg2[%c0_1, %c1] : memref<5x4xf32, #tpu.memory_space<smem>>
    %c0_2 = arith.constant 0 : index
    %c2 = arith.constant 2 : index
    %2 = memref.load %arg2[%c0_2, %c2] : memref<5x4xf32, #tpu.memory_space<smem>>
    %c0_3 = arith.constant 0 : index
    %c3 = arith.constant 3 : index
    %3 = memref.load %arg2[%c0_3, %c3] : memref<5x4xf32, #tpu.memory_space<smem>>
    %c1_4 = arith.constant 1 : index
    %c0_5 = arith.constant 0 : index
    %4 = memref.load %arg2[%c1_4, %c0_5] : memref<5x4xf32, #tpu.memory_space<smem>>
    %c1_6 = arith.constant 1 : index
    %c1_7 = arith.constant 1 : index
    %5 = memref.load %arg2[%c1_6, %c1_7] : memref<5x4xf32, #tpu.memory_space<smem>>
    %c1_8 = arith.constant 1 : index
    %c2_9 = arith.constant 2 : index
    %6 = memref.load %arg2[%c1_8, %c2_9] : memref<5x4xf32, #tpu.memory_space<smem>>
    %c1_10 = arith.constant 1 : index
    %c3_11 = arith.constant 3 : index
    %7 = memref.load %arg2[%c1_10, %c3_11] : memref<5x4xf32, #tpu.memory_space<smem>>
    %c2_12 = arith.constant 2 : index
    %c0_13 = arith.constant 0 : index
    %8 = memref.load %arg2[%c2_12, %c0_13] : memref<5x4xf32, #tpu.memory_space<smem>>
    %c2_14 = arith.constant 2 : index
    %c1_15 = arith.constant 1 : index
    %9 = memref.load %arg2[%c2_14, %c1_15] : memref<5x4xf32, #tpu.memory_space<smem>>
    %c2_16 = arith.constant 2 : index
    %c2_17 = arith.constant 2 : index
    %10 = memref.load %arg2[%c2_16, %c2_17] : memref<5x4xf32, #tpu.memory_space<smem>>
    %c2_18 = arith.constant 2 : index
    %c3_19 = arith.constant 3 : index
    %11 = memref.load %arg2[%c2_18, %c3_19] : memref<5x4xf32, #tpu.memory_space<smem>>
    %c3_20 = arith.constant 3 : index
    %c0_21 = arith.constant 0 : index
    %12 = memref.load %arg2[%c3_20, %c0_21] : memref<5x4xf32, #tpu.memory_space<smem>>
    %c3_22 = arith.constant 3 : index
    %c1_23 = arith.constant 1 : index
    %13 = memref.load %arg2[%c3_22, %c1_23] : memref<5x4xf32, #tpu.memory_space<smem>>
    %c3_24 = arith.constant 3 : index
    %c2_25 = arith.constant 2 : index
    %14 = memref.load %arg2[%c3_24, %c2_25] : memref<5x4xf32, #tpu.memory_space<smem>>
    %c3_26 = arith.constant 3 : index
    %c3_27 = arith.constant 3 : index
    %15 = memref.load %arg2[%c3_26, %c3_27] : memref<5x4xf32, #tpu.memory_space<smem>>
    %c4 = arith.constant 4 : index
    %c0_28 = arith.constant 0 : index
    %16 = memref.load %arg2[%c4, %c0_28] : memref<5x4xf32, #tpu.memory_space<smem>>
    %c4_29 = arith.constant 4 : index
    %c1_30 = arith.constant 1 : index
    %17 = memref.load %arg2[%c4_29, %c1_30] : memref<5x4xf32, #tpu.memory_space<smem>>
    %c4_31 = arith.constant 4 : index
    %c2_32 = arith.constant 2 : index
    %18 = memref.load %arg2[%c4_31, %c2_32] : memref<5x4xf32, #tpu.memory_space<smem>>
    %c4_33 = arith.constant 4 : index
    %c3_34 = arith.constant 3 : index
    %19 = memref.load %arg2[%c4_33, %c3_34] : memref<5x4xf32, #tpu.memory_space<smem>>
    %c0_35 = arith.constant 0 : index
    %c0_36 = arith.constant 0 : index
    %20 = memref.load %arg3[%c0_35, %c0_36] : memref<5x5xf32, #tpu.memory_space<smem>>
    %c0_37 = arith.constant 0 : index
    %c1_38 = arith.constant 1 : index
    %21 = memref.load %arg3[%c0_37, %c1_38] : memref<5x5xf32, #tpu.memory_space<smem>>
    %c0_39 = arith.constant 0 : index
    %c2_40 = arith.constant 2 : index
    %22 = memref.load %arg3[%c0_39, %c2_40] : memref<5x5xf32, #tpu.memory_space<smem>>
    %c0_41 = arith.constant 0 : index
    %c3_42 = arith.constant 3 : index
    %23 = memref.load %arg3[%c0_41, %c3_42] : memref<5x5xf32, #tpu.memory_space<smem>>
    %c0_43 = arith.constant 0 : index
    %c4_44 = arith.constant 4 : index
    %24 = memref.load %arg3[%c0_43, %c4_44] : memref<5x5xf32, #tpu.memory_space<smem>>
    %c1_45 = arith.constant 1 : index
    %c0_46 = arith.constant 0 : index
    %25 = memref.load %arg3[%c1_45, %c0_46] : memref<5x5xf32, #tpu.memory_space<smem>>
    %c1_47 = arith.constant 1 : index
    %c1_48 = arith.constant 1 : index
    %26 = memref.load %arg3[%c1_47, %c1_48] : memref<5x5xf32, #tpu.memory_space<smem>>
    %c1_49 = arith.constant 1 : index
    %c2_50 = arith.constant 2 : index
    %27 = memref.load %arg3[%c1_49, %c2_50] : memref<5x5xf32, #tpu.memory_space<smem>>
    %c1_51 = arith.constant 1 : index
    %c3_52 = arith.constant 3 : index
    %28 = memref.load %arg3[%c1_51, %c3_52] : memref<5x5xf32, #tpu.memory_space<smem>>
    %c1_53 = arith.constant 1 : index
    %c4_54 = arith.constant 4 : index
    %29 = memref.load %arg3[%c1_53, %c4_54] : memref<5x5xf32, #tpu.memory_space<smem>>
    %c2_55 = arith.constant 2 : index
    %c0_56 = arith.constant 0 : index
    %30 = memref.load %arg3[%c2_55, %c0_56] : memref<5x5xf32, #tpu.memory_space<smem>>
    %c2_57 = arith.constant 2 : index
    %c1_58 = arith.constant 1 : index
    %31 = memref.load %arg3[%c2_57, %c1_58] : memref<5x5xf32, #tpu.memory_space<smem>>
    %c2_59 = arith.constant 2 : index
    %c2_60 = arith.constant 2 : index
    %32 = memref.load %arg3[%c2_59, %c2_60] : memref<5x5xf32, #tpu.memory_space<smem>>
    %c2_61 = arith.constant 2 : index
    %c3_62 = arith.constant 3 : index
    %33 = memref.load %arg3[%c2_61, %c3_62] : memref<5x5xf32, #tpu.memory_space<smem>>
    %c2_63 = arith.constant 2 : index
    %c4_64 = arith.constant 4 : index
    %34 = memref.load %arg3[%c2_63, %c4_64] : memref<5x5xf32, #tpu.memory_space<smem>>
    %c3_65 = arith.constant 3 : index
    %c0_66 = arith.constant 0 : index
    %35 = memref.load %arg3[%c3_65, %c0_66] : memref<5x5xf32, #tpu.memory_space<smem>>
    %c3_67 = arith.constant 3 : index
    %c1_68 = arith.constant 1 : index
    %36 = memref.load %arg3[%c3_67, %c1_68] : memref<5x5xf32, #tpu.memory_space<smem>>
    %c3_69 = arith.constant 3 : index
    %c2_70 = arith.constant 2 : index
    %37 = memref.load %arg3[%c3_69, %c2_70] : memref<5x5xf32, #tpu.memory_space<smem>>
    %c3_71 = arith.constant 3 : index
    %c3_72 = arith.constant 3 : index
    %38 = memref.load %arg3[%c3_71, %c3_72] : memref<5x5xf32, #tpu.memory_space<smem>>
    %c3_73 = arith.constant 3 : index
    %c4_74 = arith.constant 4 : index
    %39 = memref.load %arg3[%c3_73, %c4_74] : memref<5x5xf32, #tpu.memory_space<smem>>
    %c4_75 = arith.constant 4 : index
    %c0_76 = arith.constant 0 : index
    %40 = memref.load %arg3[%c4_75, %c0_76] : memref<5x5xf32, #tpu.memory_space<smem>>
    %c4_77 = arith.constant 4 : index
    %c1_78 = arith.constant 1 : index
    %41 = memref.load %arg3[%c4_77, %c1_78] : memref<5x5xf32, #tpu.memory_space<smem>>
    %c4_79 = arith.constant 4 : index
    %c2_80 = arith.constant 2 : index
    %42 = memref.load %arg3[%c4_79, %c2_80] : memref<5x5xf32, #tpu.memory_space<smem>>
    %c4_81 = arith.constant 4 : index
    %c3_82 = arith.constant 3 : index
    %43 = memref.load %arg3[%c4_81, %c3_82] : memref<5x5xf32, #tpu.memory_space<smem>>
    %c4_83 = arith.constant 4 : index
    %c4_84 = arith.constant 4 : index
    %44 = memref.load %arg3[%c4_83, %c4_84] : memref<5x5xf32, #tpu.memory_space<smem>>
    %c0_i32 = arith.constant 0 : i32
    %c16_i32 = arith.constant 16 : i32
    %45 = arith.muli %c0_i32, %c16_i32 : i32
    %46 = tpu.assume_multiple %45, 16 : i32
    %c0_85 = arith.constant 0 : index
    %47 = arith.index_cast %46 : i32 to index
    %c0_86 = arith.constant 0 : index
    %48 = vector.load %arg1[%c0_85, %47, %c0_86] : memref<20x16x128xf32, #tpu.memory_space<vmem>>, vector<1x16x128xf32>
    %49 = vector.shape_cast %48 : vector<1x16x128xf32> to vector<16x128xf32>
    %c1_87 = arith.constant 1 : index
    %50 = arith.index_cast %46 : i32 to index
    %c0_88 = arith.constant 0 : index
    %51 = vector.load %arg1[%c1_87, %50, %c0_88] : memref<20x16x128xf32, #tpu.memory_space<vmem>>, vector<1x16x128xf32>
    %52 = vector.shape_cast %51 : vector<1x16x128xf32> to vector<16x128xf32>
    %c2_89 = arith.constant 2 : index
    %53 = arith.index_cast %46 : i32 to index
    %c0_90 = arith.constant 0 : index
    %54 = vector.load %arg1[%c2_89, %53, %c0_90] : memref<20x16x128xf32, #tpu.memory_space<vmem>>, vector<1x16x128xf32>
    %55 = vector.shape_cast %54 : vector<1x16x128xf32> to vector<16x128xf32>
    %c3_91 = arith.constant 3 : index
    %56 = arith.index_cast %46 : i32 to index
    %c0_92 = arith.constant 0 : index
    %57 = vector.load %arg1[%c3_91, %56, %c0_92] : memref<20x16x128xf32, #tpu.memory_space<vmem>>, vector<1x16x128xf32>
    %58 = vector.shape_cast %57 : vector<1x16x128xf32> to vector<16x128xf32>
    %59 = vector.broadcast %0 : f32 to vector<16x128xf32>
    %60 = arith.mulf %49, %59 : vector<16x128xf32>
    %61 = vector.broadcast %1 : f32 to vector<16x128xf32>
    %62 = arith.mulf %52, %61 : vector<16x128xf32>
    %63 = arith.addf %60, %62 : vector<16x128xf32>
    %64 = vector.broadcast %2 : f32 to vector<16x128xf32>
    %65 = arith.mulf %55, %64 : vector<16x128xf32>
    %66 = arith.addf %63, %65 : vector<16x128xf32>
    %67 = vector.broadcast %3 : f32 to vector<16x128xf32>
    %68 = arith.mulf %58, %67 : vector<16x128xf32>
    %69 = arith.addf %66, %68 : vector<16x128xf32>
    %70 = vector.broadcast %20 : f32 to vector<16x128xf32>
    %71 = arith.addf %69, %70 : vector<16x128xf32>
    %cst = arith.constant 0.000000e+00 : f32
    %72 = vector.broadcast %cst : f32 to vector<16x128xf32>
    %73 = arith.maximumf %71, %72 : vector<16x128xf32>
    %74 = vector.broadcast %4 : f32 to vector<16x128xf32>
    %75 = arith.mulf %49, %74 : vector<16x128xf32>
    %76 = vector.broadcast %5 : f32 to vector<16x128xf32>
    %77 = arith.mulf %52, %76 : vector<16x128xf32>
    %78 = arith.addf %75, %77 : vector<16x128xf32>
    %79 = vector.broadcast %6 : f32 to vector<16x128xf32>
    %80 = arith.mulf %55, %79 : vector<16x128xf32>
    %81 = arith.addf %78, %80 : vector<16x128xf32>
    %82 = vector.broadcast %7 : f32 to vector<16x128xf32>
    %83 = arith.mulf %58, %82 : vector<16x128xf32>
    %84 = arith.addf %81, %83 : vector<16x128xf32>
    %85 = vector.broadcast %21 : f32 to vector<16x128xf32>
    %86 = arith.addf %84, %85 : vector<16x128xf32>
    %cst_93 = arith.constant 0.000000e+00 : f32
    %87 = vector.broadcast %cst_93 : f32 to vector<16x128xf32>
    %88 = arith.maximumf %86, %87 : vector<16x128xf32>
    %89 = arith.addf %73, %88 : vector<16x128xf32>
    %90 = vector.broadcast %8 : f32 to vector<16x128xf32>
    %91 = arith.mulf %49, %90 : vector<16x128xf32>
    %92 = vector.broadcast %9 : f32 to vector<16x128xf32>
    %93 = arith.mulf %52, %92 : vector<16x128xf32>
    %94 = arith.addf %91, %93 : vector<16x128xf32>
    %95 = vector.broadcast %10 : f32 to vector<16x128xf32>
    %96 = arith.mulf %55, %95 : vector<16x128xf32>
    %97 = arith.addf %94, %96 : vector<16x128xf32>
    %98 = vector.broadcast %11 : f32 to vector<16x128xf32>
    %99 = arith.mulf %58, %98 : vector<16x128xf32>
    %100 = arith.addf %97, %99 : vector<16x128xf32>
    %101 = vector.broadcast %22 : f32 to vector<16x128xf32>
    %102 = arith.addf %100, %101 : vector<16x128xf32>
    %cst_94 = arith.constant 0.000000e+00 : f32
    %103 = vector.broadcast %cst_94 : f32 to vector<16x128xf32>
    %104 = arith.maximumf %102, %103 : vector<16x128xf32>
    %105 = arith.addf %89, %104 : vector<16x128xf32>
    %106 = vector.broadcast %12 : f32 to vector<16x128xf32>
    %107 = arith.mulf %49, %106 : vector<16x128xf32>
    %108 = vector.broadcast %13 : f32 to vector<16x128xf32>
    %109 = arith.mulf %52, %108 : vector<16x128xf32>
    %110 = arith.addf %107, %109 : vector<16x128xf32>
    %111 = vector.broadcast %14 : f32 to vector<16x128xf32>
    %112 = arith.mulf %55, %111 : vector<16x128xf32>
    %113 = arith.addf %110, %112 : vector<16x128xf32>
    %114 = vector.broadcast %15 : f32 to vector<16x128xf32>
    %115 = arith.mulf %58, %114 : vector<16x128xf32>
    %116 = arith.addf %113, %115 : vector<16x128xf32>
    %117 = vector.broadcast %23 : f32 to vector<16x128xf32>
    %118 = arith.addf %116, %117 : vector<16x128xf32>
    %cst_95 = arith.constant 0.000000e+00 : f32
    %119 = vector.broadcast %cst_95 : f32 to vector<16x128xf32>
    %120 = arith.maximumf %118, %119 : vector<16x128xf32>
    %121 = arith.addf %105, %120 : vector<16x128xf32>
    %122 = vector.broadcast %16 : f32 to vector<16x128xf32>
    %123 = arith.mulf %49, %122 : vector<16x128xf32>
    %124 = vector.broadcast %17 : f32 to vector<16x128xf32>
    %125 = arith.mulf %52, %124 : vector<16x128xf32>
    %126 = arith.addf %123, %125 : vector<16x128xf32>
    %127 = vector.broadcast %18 : f32 to vector<16x128xf32>
    %128 = arith.mulf %55, %127 : vector<16x128xf32>
    %129 = arith.addf %126, %128 : vector<16x128xf32>
    %130 = vector.broadcast %19 : f32 to vector<16x128xf32>
    %131 = arith.mulf %58, %130 : vector<16x128xf32>
    %132 = arith.addf %129, %131 : vector<16x128xf32>
    %133 = vector.broadcast %24 : f32 to vector<16x128xf32>
    %134 = arith.addf %132, %133 : vector<16x128xf32>
    %cst_96 = arith.constant 0.000000e+00 : f32
    %135 = vector.broadcast %cst_96 : f32 to vector<16x128xf32>
    %136 = arith.maximumf %134, %135 : vector<16x128xf32>
    %137 = arith.addf %121, %136 : vector<16x128xf32>
    %c4_97 = arith.constant 4 : index
    %138 = arith.index_cast %46 : i32 to index
    %c0_98 = arith.constant 0 : index
    %139 = vector.load %arg1[%c4_97, %138, %c0_98] : memref<20x16x128xf32, #tpu.memory_space<vmem>>, vector<1x16x128xf32>
    %140 = vector.shape_cast %139 : vector<1x16x128xf32> to vector<16x128xf32>
    %c5 = arith.constant 5 : index
    %141 = arith.index_cast %46 : i32 to index
    %c0_99 = arith.constant 0 : index
    %142 = vector.load %arg1[%c5, %141, %c0_99] : memref<20x16x128xf32, #tpu.memory_space<vmem>>, vector<1x16x128xf32>
    %143 = vector.shape_cast %142 : vector<1x16x128xf32> to vector<16x128xf32>
    %c6 = arith.constant 6 : index
    %144 = arith.index_cast %46 : i32 to index
    %c0_100 = arith.constant 0 : index
    %145 = vector.load %arg1[%c6, %144, %c0_100] : memref<20x16x128xf32, #tpu.memory_space<vmem>>, vector<1x16x128xf32>
    %146 = vector.shape_cast %145 : vector<1x16x128xf32> to vector<16x128xf32>
    %c7 = arith.constant 7 : index
    %147 = arith.index_cast %46 : i32 to index
    %c0_101 = arith.constant 0 : index
    %148 = vector.load %arg1[%c7, %147, %c0_101] : memref<20x16x128xf32, #tpu.memory_space<vmem>>, vector<1x16x128xf32>
    %149 = vector.shape_cast %148 : vector<1x16x128xf32> to vector<16x128xf32>
    %150 = vector.broadcast %0 : f32 to vector<16x128xf32>
    %151 = arith.mulf %140, %150 : vector<16x128xf32>
    %152 = vector.broadcast %1 : f32 to vector<16x128xf32>
    %153 = arith.mulf %143, %152 : vector<16x128xf32>
    %154 = arith.addf %151, %153 : vector<16x128xf32>
    %155 = vector.broadcast %2 : f32 to vector<16x128xf32>
    %156 = arith.mulf %146, %155 : vector<16x128xf32>
    %157 = arith.addf %154, %156 : vector<16x128xf32>
    %158 = vector.broadcast %3 : f32 to vector<16x128xf32>
    %159 = arith.mulf %149, %158 : vector<16x128xf32>
    %160 = arith.addf %157, %159 : vector<16x128xf32>
    %161 = vector.broadcast %25 : f32 to vector<16x128xf32>
    %162 = arith.addf %160, %161 : vector<16x128xf32>
    %cst_102 = arith.constant 0.000000e+00 : f32
    %163 = vector.broadcast %cst_102 : f32 to vector<16x128xf32>
    %164 = arith.maximumf %162, %163 : vector<16x128xf32>
    %165 = vector.broadcast %4 : f32 to vector<16x128xf32>
    %166 = arith.mulf %140, %165 : vector<16x128xf32>
    %167 = vector.broadcast %5 : f32 to vector<16x128xf32>
    %168 = arith.mulf %143, %167 : vector<16x128xf32>
    %169 = arith.addf %166, %168 : vector<16x128xf32>
    %170 = vector.broadcast %6 : f32 to vector<16x128xf32>
    %171 = arith.mulf %146, %170 : vector<16x128xf32>
    %172 = arith.addf %169, %171 : vector<16x128xf32>
    %173 = vector.broadcast %7 : f32 to vector<16x128xf32>
    %174 = arith.mulf %149, %173 : vector<16x128xf32>
    %175 = arith.addf %172, %174 : vector<16x128xf32>
    %176 = vector.broadcast %26 : f32 to vector<16x128xf32>
    %177 = arith.addf %175, %176 : vector<16x128xf32>
    %cst_103 = arith.constant 0.000000e+00 : f32
    %178 = vector.broadcast %cst_103 : f32 to vector<16x128xf32>
    %179 = arith.maximumf %177, %178 : vector<16x128xf32>
    %180 = arith.addf %164, %179 : vector<16x128xf32>
    %181 = vector.broadcast %8 : f32 to vector<16x128xf32>
    %182 = arith.mulf %140, %181 : vector<16x128xf32>
    %183 = vector.broadcast %9 : f32 to vector<16x128xf32>
    %184 = arith.mulf %143, %183 : vector<16x128xf32>
    %185 = arith.addf %182, %184 : vector<16x128xf32>
    %186 = vector.broadcast %10 : f32 to vector<16x128xf32>
    %187 = arith.mulf %146, %186 : vector<16x128xf32>
    %188 = arith.addf %185, %187 : vector<16x128xf32>
    %189 = vector.broadcast %11 : f32 to vector<16x128xf32>
    %190 = arith.mulf %149, %189 : vector<16x128xf32>
    %191 = arith.addf %188, %190 : vector<16x128xf32>
    %192 = vector.broadcast %27 : f32 to vector<16x128xf32>
    %193 = arith.addf %191, %192 : vector<16x128xf32>
    %cst_104 = arith.constant 0.000000e+00 : f32
    %194 = vector.broadcast %cst_104 : f32 to vector<16x128xf32>
    %195 = arith.maximumf %193, %194 : vector<16x128xf32>
    %196 = arith.addf %180, %195 : vector<16x128xf32>
    %197 = vector.broadcast %12 : f32 to vector<16x128xf32>
    %198 = arith.mulf %140, %197 : vector<16x128xf32>
    %199 = vector.broadcast %13 : f32 to vector<16x128xf32>
    %200 = arith.mulf %143, %199 : vector<16x128xf32>
    %201 = arith.addf %198, %200 : vector<16x128xf32>
    %202 = vector.broadcast %14 : f32 to vector<16x128xf32>
    %203 = arith.mulf %146, %202 : vector<16x128xf32>
    %204 = arith.addf %201, %203 : vector<16x128xf32>
    %205 = vector.broadcast %15 : f32 to vector<16x128xf32>
    %206 = arith.mulf %149, %205 : vector<16x128xf32>
    %207 = arith.addf %204, %206 : vector<16x128xf32>
    %208 = vector.broadcast %28 : f32 to vector<16x128xf32>
    %209 = arith.addf %207, %208 : vector<16x128xf32>
    %cst_105 = arith.constant 0.000000e+00 : f32
    %210 = vector.broadcast %cst_105 : f32 to vector<16x128xf32>
    %211 = arith.maximumf %209, %210 : vector<16x128xf32>
    %212 = arith.addf %196, %211 : vector<16x128xf32>
    %213 = vector.broadcast %16 : f32 to vector<16x128xf32>
    %214 = arith.mulf %140, %213 : vector<16x128xf32>
    %215 = vector.broadcast %17 : f32 to vector<16x128xf32>
    %216 = arith.mulf %143, %215 : vector<16x128xf32>
    %217 = arith.addf %214, %216 : vector<16x128xf32>
    %218 = vector.broadcast %18 : f32 to vector<16x128xf32>
    %219 = arith.mulf %146, %218 : vector<16x128xf32>
    %220 = arith.addf %217, %219 : vector<16x128xf32>
    %221 = vector.broadcast %19 : f32 to vector<16x128xf32>
    %222 = arith.mulf %149, %221 : vector<16x128xf32>
    %223 = arith.addf %220, %222 : vector<16x128xf32>
    %224 = vector.broadcast %29 : f32 to vector<16x128xf32>
    %225 = arith.addf %223, %224 : vector<16x128xf32>
    %cst_106 = arith.constant 0.000000e+00 : f32
    %226 = vector.broadcast %cst_106 : f32 to vector<16x128xf32>
    %227 = arith.maximumf %225, %226 : vector<16x128xf32>
    %228 = arith.addf %212, %227 : vector<16x128xf32>
    %c8 = arith.constant 8 : index
    %229 = arith.index_cast %46 : i32 to index
    %c0_107 = arith.constant 0 : index
    %230 = vector.load %arg1[%c8, %229, %c0_107] : memref<20x16x128xf32, #tpu.memory_space<vmem>>, vector<1x16x128xf32>
    %231 = vector.shape_cast %230 : vector<1x16x128xf32> to vector<16x128xf32>
    %c9 = arith.constant 9 : index
    %232 = arith.index_cast %46 : i32 to index
    %c0_108 = arith.constant 0 : index
    %233 = vector.load %arg1[%c9, %232, %c0_108] : memref<20x16x128xf32, #tpu.memory_space<vmem>>, vector<1x16x128xf32>
    %234 = vector.shape_cast %233 : vector<1x16x128xf32> to vector<16x128xf32>
    %c10 = arith.constant 10 : index
    %235 = arith.index_cast %46 : i32 to index
    %c0_109 = arith.constant 0 : index
    %236 = vector.load %arg1[%c10, %235, %c0_109] : memref<20x16x128xf32, #tpu.memory_space<vmem>>, vector<1x16x128xf32>
    %237 = vector.shape_cast %236 : vector<1x16x128xf32> to vector<16x128xf32>
    %c11 = arith.constant 11 : index
    %238 = arith.index_cast %46 : i32 to index
    %c0_110 = arith.constant 0 : index
    %239 = vector.load %arg1[%c11, %238, %c0_110] : memref<20x16x128xf32, #tpu.memory_space<vmem>>, vector<1x16x128xf32>
    %240 = vector.shape_cast %239 : vector<1x16x128xf32> to vector<16x128xf32>
    %241 = vector.broadcast %0 : f32 to vector<16x128xf32>
    %242 = arith.mulf %231, %241 : vector<16x128xf32>
    %243 = vector.broadcast %1 : f32 to vector<16x128xf32>
    %244 = arith.mulf %234, %243 : vector<16x128xf32>
    %245 = arith.addf %242, %244 : vector<16x128xf32>
    %246 = vector.broadcast %2 : f32 to vector<16x128xf32>
    %247 = arith.mulf %237, %246 : vector<16x128xf32>
    %248 = arith.addf %245, %247 : vector<16x128xf32>
    %249 = vector.broadcast %3 : f32 to vector<16x128xf32>
    %250 = arith.mulf %240, %249 : vector<16x128xf32>
    %251 = arith.addf %248, %250 : vector<16x128xf32>
    %252 = vector.broadcast %30 : f32 to vector<16x128xf32>
    %253 = arith.addf %251, %252 : vector<16x128xf32>
    %cst_111 = arith.constant 0.000000e+00 : f32
    %254 = vector.broadcast %cst_111 : f32 to vector<16x128xf32>
    %255 = arith.maximumf %253, %254 : vector<16x128xf32>
    %256 = vector.broadcast %4 : f32 to vector<16x128xf32>
    %257 = arith.mulf %231, %256 : vector<16x128xf32>
    %258 = vector.broadcast %5 : f32 to vector<16x128xf32>
    %259 = arith.mulf %234, %258 : vector<16x128xf32>
    %260 = arith.addf %257, %259 : vector<16x128xf32>
    %261 = vector.broadcast %6 : f32 to vector<16x128xf32>
    %262 = arith.mulf %237, %261 : vector<16x128xf32>
    %263 = arith.addf %260, %262 : vector<16x128xf32>
    %264 = vector.broadcast %7 : f32 to vector<16x128xf32>
    %265 = arith.mulf %240, %264 : vector<16x128xf32>
    %266 = arith.addf %263, %265 : vector<16x128xf32>
    %267 = vector.broadcast %31 : f32 to vector<16x128xf32>
    %268 = arith.addf %266, %267 : vector<16x128xf32>
    %cst_112 = arith.constant 0.000000e+00 : f32
    %269 = vector.broadcast %cst_112 : f32 to vector<16x128xf32>
    %270 = arith.maximumf %268, %269 : vector<16x128xf32>
    %271 = arith.addf %255, %270 : vector<16x128xf32>
    %272 = vector.broadcast %8 : f32 to vector<16x128xf32>
    %273 = arith.mulf %231, %272 : vector<16x128xf32>
    %274 = vector.broadcast %9 : f32 to vector<16x128xf32>
    %275 = arith.mulf %234, %274 : vector<16x128xf32>
    %276 = arith.addf %273, %275 : vector<16x128xf32>
    %277 = vector.broadcast %10 : f32 to vector<16x128xf32>
    %278 = arith.mulf %237, %277 : vector<16x128xf32>
    %279 = arith.addf %276, %278 : vector<16x128xf32>
    %280 = vector.broadcast %11 : f32 to vector<16x128xf32>
    %281 = arith.mulf %240, %280 : vector<16x128xf32>
    %282 = arith.addf %279, %281 : vector<16x128xf32>
    %283 = vector.broadcast %32 : f32 to vector<16x128xf32>
    %284 = arith.addf %282, %283 : vector<16x128xf32>
    %cst_113 = arith.constant 0.000000e+00 : f32
    %285 = vector.broadcast %cst_113 : f32 to vector<16x128xf32>
    %286 = arith.maximumf %284, %285 : vector<16x128xf32>
    %287 = arith.addf %271, %286 : vector<16x128xf32>
    %288 = vector.broadcast %12 : f32 to vector<16x128xf32>
    %289 = arith.mulf %231, %288 : vector<16x128xf32>
    %290 = vector.broadcast %13 : f32 to vector<16x128xf32>
    %291 = arith.mulf %234, %290 : vector<16x128xf32>
    %292 = arith.addf %289, %291 : vector<16x128xf32>
    %293 = vector.broadcast %14 : f32 to vector<16x128xf32>
    %294 = arith.mulf %237, %293 : vector<16x128xf32>
    %295 = arith.addf %292, %294 : vector<16x128xf32>
    %296 = vector.broadcast %15 : f32 to vector<16x128xf32>
    %297 = arith.mulf %240, %296 : vector<16x128xf32>
    %298 = arith.addf %295, %297 : vector<16x128xf32>
    %299 = vector.broadcast %33 : f32 to vector<16x128xf32>
    %300 = arith.addf %298, %299 : vector<16x128xf32>
    %cst_114 = arith.constant 0.000000e+00 : f32
    %301 = vector.broadcast %cst_114 : f32 to vector<16x128xf32>
    %302 = arith.maximumf %300, %301 : vector<16x128xf32>
    %303 = arith.addf %287, %302 : vector<16x128xf32>
    %304 = vector.broadcast %16 : f32 to vector<16x128xf32>
    %305 = arith.mulf %231, %304 : vector<16x128xf32>
    %306 = vector.broadcast %17 : f32 to vector<16x128xf32>
    %307 = arith.mulf %234, %306 : vector<16x128xf32>
    %308 = arith.addf %305, %307 : vector<16x128xf32>
    %309 = vector.broadcast %18 : f32 to vector<16x128xf32>
    %310 = arith.mulf %237, %309 : vector<16x128xf32>
    %311 = arith.addf %308, %310 : vector<16x128xf32>
    %312 = vector.broadcast %19 : f32 to vector<16x128xf32>
    %313 = arith.mulf %240, %312 : vector<16x128xf32>
    %314 = arith.addf %311, %313 : vector<16x128xf32>
    %315 = vector.broadcast %34 : f32 to vector<16x128xf32>
    %316 = arith.addf %314, %315 : vector<16x128xf32>
    %cst_115 = arith.constant 0.000000e+00 : f32
    %317 = vector.broadcast %cst_115 : f32 to vector<16x128xf32>
    %318 = arith.maximumf %316, %317 : vector<16x128xf32>
    %319 = arith.addf %303, %318 : vector<16x128xf32>
    %c12 = arith.constant 12 : index
    %320 = arith.index_cast %46 : i32 to index
    %c0_116 = arith.constant 0 : index
    %321 = vector.load %arg1[%c12, %320, %c0_116] : memref<20x16x128xf32, #tpu.memory_space<vmem>>, vector<1x16x128xf32>
    %322 = vector.shape_cast %321 : vector<1x16x128xf32> to vector<16x128xf32>
    %c13 = arith.constant 13 : index
    %323 = arith.index_cast %46 : i32 to index
    %c0_117 = arith.constant 0 : index
    %324 = vector.load %arg1[%c13, %323, %c0_117] : memref<20x16x128xf32, #tpu.memory_space<vmem>>, vector<1x16x128xf32>
    %325 = vector.shape_cast %324 : vector<1x16x128xf32> to vector<16x128xf32>
    %c14 = arith.constant 14 : index
    %326 = arith.index_cast %46 : i32 to index
    %c0_118 = arith.constant 0 : index
    %327 = vector.load %arg1[%c14, %326, %c0_118] : memref<20x16x128xf32, #tpu.memory_space<vmem>>, vector<1x16x128xf32>
    %328 = vector.shape_cast %327 : vector<1x16x128xf32> to vector<16x128xf32>
    %c15 = arith.constant 15 : index
    %329 = arith.index_cast %46 : i32 to index
    %c0_119 = arith.constant 0 : index
    %330 = vector.load %arg1[%c15, %329, %c0_119] : memref<20x16x128xf32, #tpu.memory_space<vmem>>, vector<1x16x128xf32>
    %331 = vector.shape_cast %330 : vector<1x16x128xf32> to vector<16x128xf32>
    %332 = vector.broadcast %0 : f32 to vector<16x128xf32>
    %333 = arith.mulf %322, %332 : vector<16x128xf32>
    %334 = vector.broadcast %1 : f32 to vector<16x128xf32>
    %335 = arith.mulf %325, %334 : vector<16x128xf32>
    %336 = arith.addf %333, %335 : vector<16x128xf32>
    %337 = vector.broadcast %2 : f32 to vector<16x128xf32>
    %338 = arith.mulf %328, %337 : vector<16x128xf32>
    %339 = arith.addf %336, %338 : vector<16x128xf32>
    %340 = vector.broadcast %3 : f32 to vector<16x128xf32>
    %341 = arith.mulf %331, %340 : vector<16x128xf32>
    %342 = arith.addf %339, %341 : vector<16x128xf32>
    %343 = vector.broadcast %35 : f32 to vector<16x128xf32>
    %344 = arith.addf %342, %343 : vector<16x128xf32>
    %cst_120 = arith.constant 0.000000e+00 : f32
    %345 = vector.broadcast %cst_120 : f32 to vector<16x128xf32>
    %346 = arith.maximumf %344, %345 : vector<16x128xf32>
    %347 = vector.broadcast %4 : f32 to vector<16x128xf32>
    %348 = arith.mulf %322, %347 : vector<16x128xf32>
    %349 = vector.broadcast %5 : f32 to vector<16x128xf32>
    %350 = arith.mulf %325, %349 : vector<16x128xf32>
    %351 = arith.addf %348, %350 : vector<16x128xf32>
    %352 = vector.broadcast %6 : f32 to vector<16x128xf32>
    %353 = arith.mulf %328, %352 : vector<16x128xf32>
    %354 = arith.addf %351, %353 : vector<16x128xf32>
    %355 = vector.broadcast %7 : f32 to vector<16x128xf32>
    %356 = arith.mulf %331, %355 : vector<16x128xf32>
    %357 = arith.addf %354, %356 : vector<16x128xf32>
    %358 = vector.broadcast %36 : f32 to vector<16x128xf32>
    %359 = arith.addf %357, %358 : vector<16x128xf32>
    %cst_121 = arith.constant 0.000000e+00 : f32
    %360 = vector.broadcast %cst_121 : f32 to vector<16x128xf32>
    %361 = arith.maximumf %359, %360 : vector<16x128xf32>
    %362 = arith.addf %346, %361 : vector<16x128xf32>
    %363 = vector.broadcast %8 : f32 to vector<16x128xf32>
    %364 = arith.mulf %322, %363 : vector<16x128xf32>
    %365 = vector.broadcast %9 : f32 to vector<16x128xf32>
    %366 = arith.mulf %325, %365 : vector<16x128xf32>
    %367 = arith.addf %364, %366 : vector<16x128xf32>
    %368 = vector.broadcast %10 : f32 to vector<16x128xf32>
    %369 = arith.mulf %328, %368 : vector<16x128xf32>
    %370 = arith.addf %367, %369 : vector<16x128xf32>
    %371 = vector.broadcast %11 : f32 to vector<16x128xf32>
    %372 = arith.mulf %331, %371 : vector<16x128xf32>
    %373 = arith.addf %370, %372 : vector<16x128xf32>
    %374 = vector.broadcast %37 : f32 to vector<16x128xf32>
    %375 = arith.addf %373, %374 : vector<16x128xf32>
    %cst_122 = arith.constant 0.000000e+00 : f32
    %376 = vector.broadcast %cst_122 : f32 to vector<16x128xf32>
    %377 = arith.maximumf %375, %376 : vector<16x128xf32>
    %378 = arith.addf %362, %377 : vector<16x128xf32>
    %379 = vector.broadcast %12 : f32 to vector<16x128xf32>
    %380 = arith.mulf %322, %379 : vector<16x128xf32>
    %381 = vector.broadcast %13 : f32 to vector<16x128xf32>
    %382 = arith.mulf %325, %381 : vector<16x128xf32>
    %383 = arith.addf %380, %382 : vector<16x128xf32>
    %384 = vector.broadcast %14 : f32 to vector<16x128xf32>
    %385 = arith.mulf %328, %384 : vector<16x128xf32>
    %386 = arith.addf %383, %385 : vector<16x128xf32>
    %387 = vector.broadcast %15 : f32 to vector<16x128xf32>
    %388 = arith.mulf %331, %387 : vector<16x128xf32>
    %389 = arith.addf %386, %388 : vector<16x128xf32>
    %390 = vector.broadcast %38 : f32 to vector<16x128xf32>
    %391 = arith.addf %389, %390 : vector<16x128xf32>
    %cst_123 = arith.constant 0.000000e+00 : f32
    %392 = vector.broadcast %cst_123 : f32 to vector<16x128xf32>
    %393 = arith.maximumf %391, %392 : vector<16x128xf32>
    %394 = arith.addf %378, %393 : vector<16x128xf32>
    %395 = vector.broadcast %16 : f32 to vector<16x128xf32>
    %396 = arith.mulf %322, %395 : vector<16x128xf32>
    %397 = vector.broadcast %17 : f32 to vector<16x128xf32>
    %398 = arith.mulf %325, %397 : vector<16x128xf32>
    %399 = arith.addf %396, %398 : vector<16x128xf32>
    %400 = vector.broadcast %18 : f32 to vector<16x128xf32>
    %401 = arith.mulf %328, %400 : vector<16x128xf32>
    %402 = arith.addf %399, %401 : vector<16x128xf32>
    %403 = vector.broadcast %19 : f32 to vector<16x128xf32>
    %404 = arith.mulf %331, %403 : vector<16x128xf32>
    %405 = arith.addf %402, %404 : vector<16x128xf32>
    %406 = vector.broadcast %39 : f32 to vector<16x128xf32>
    %407 = arith.addf %405, %406 : vector<16x128xf32>
    %cst_124 = arith.constant 0.000000e+00 : f32
    %408 = vector.broadcast %cst_124 : f32 to vector<16x128xf32>
    %409 = arith.maximumf %407, %408 : vector<16x128xf32>
    %410 = arith.addf %394, %409 : vector<16x128xf32>
    %c16 = arith.constant 16 : index
    %411 = arith.index_cast %46 : i32 to index
    %c0_125 = arith.constant 0 : index
    %412 = vector.load %arg1[%c16, %411, %c0_125] : memref<20x16x128xf32, #tpu.memory_space<vmem>>, vector<1x16x128xf32>
    %413 = vector.shape_cast %412 : vector<1x16x128xf32> to vector<16x128xf32>
    %c17 = arith.constant 17 : index
    %414 = arith.index_cast %46 : i32 to index
    %c0_126 = arith.constant 0 : index
    %415 = vector.load %arg1[%c17, %414, %c0_126] : memref<20x16x128xf32, #tpu.memory_space<vmem>>, vector<1x16x128xf32>
    %416 = vector.shape_cast %415 : vector<1x16x128xf32> to vector<16x128xf32>
    %c18 = arith.constant 18 : index
    %417 = arith.index_cast %46 : i32 to index
    %c0_127 = arith.constant 0 : index
    %418 = vector.load %arg1[%c18, %417, %c0_127] : memref<20x16x128xf32, #tpu.memory_space<vmem>>, vector<1x16x128xf32>
    %419 = vector.shape_cast %418 : vector<1x16x128xf32> to vector<16x128xf32>
    %c19 = arith.constant 19 : index
    %420 = arith.index_cast %46 : i32 to index
    %c0_128 = arith.constant 0 : index
    %421 = vector.load %arg1[%c19, %420, %c0_128] : memref<20x16x128xf32, #tpu.memory_space<vmem>>, vector<1x16x128xf32>
    %422 = vector.shape_cast %421 : vector<1x16x128xf32> to vector<16x128xf32>
    %423 = vector.broadcast %0 : f32 to vector<16x128xf32>
    %424 = arith.mulf %413, %423 : vector<16x128xf32>
    %425 = vector.broadcast %1 : f32 to vector<16x128xf32>
    %426 = arith.mulf %416, %425 : vector<16x128xf32>
    %427 = arith.addf %424, %426 : vector<16x128xf32>
    %428 = vector.broadcast %2 : f32 to vector<16x128xf32>
    %429 = arith.mulf %419, %428 : vector<16x128xf32>
    %430 = arith.addf %427, %429 : vector<16x128xf32>
    %431 = vector.broadcast %3 : f32 to vector<16x128xf32>
    %432 = arith.mulf %422, %431 : vector<16x128xf32>
    %433 = arith.addf %430, %432 : vector<16x128xf32>
    %434 = vector.broadcast %40 : f32 to vector<16x128xf32>
    %435 = arith.addf %433, %434 : vector<16x128xf32>
    %cst_129 = arith.constant 0.000000e+00 : f32
    %436 = vector.broadcast %cst_129 : f32 to vector<16x128xf32>
    %437 = arith.maximumf %435, %436 : vector<16x128xf32>
    %438 = vector.broadcast %4 : f32 to vector<16x128xf32>
    %439 = arith.mulf %413, %438 : vector<16x128xf32>
    %440 = vector.broadcast %5 : f32 to vector<16x128xf32>
    %441 = arith.mulf %416, %440 : vector<16x128xf32>
    %442 = arith.addf %439, %441 : vector<16x128xf32>
    %443 = vector.broadcast %6 : f32 to vector<16x128xf32>
    %444 = arith.mulf %419, %443 : vector<16x128xf32>
    %445 = arith.addf %442, %444 : vector<16x128xf32>
    %446 = vector.broadcast %7 : f32 to vector<16x128xf32>
    %447 = arith.mulf %422, %446 : vector<16x128xf32>
    %448 = arith.addf %445, %447 : vector<16x128xf32>
    %449 = vector.broadcast %41 : f32 to vector<16x128xf32>
    %450 = arith.addf %448, %449 : vector<16x128xf32>
    %cst_130 = arith.constant 0.000000e+00 : f32
    %451 = vector.broadcast %cst_130 : f32 to vector<16x128xf32>
    %452 = arith.maximumf %450, %451 : vector<16x128xf32>
    %453 = arith.addf %437, %452 : vector<16x128xf32>
    %454 = vector.broadcast %8 : f32 to vector<16x128xf32>
    %455 = arith.mulf %413, %454 : vector<16x128xf32>
    %456 = vector.broadcast %9 : f32 to vector<16x128xf32>
    %457 = arith.mulf %416, %456 : vector<16x128xf32>
    %458 = arith.addf %455, %457 : vector<16x128xf32>
    %459 = vector.broadcast %10 : f32 to vector<16x128xf32>
    %460 = arith.mulf %419, %459 : vector<16x128xf32>
    %461 = arith.addf %458, %460 : vector<16x128xf32>
    %462 = vector.broadcast %11 : f32 to vector<16x128xf32>
    %463 = arith.mulf %422, %462 : vector<16x128xf32>
    %464 = arith.addf %461, %463 : vector<16x128xf32>
    %465 = vector.broadcast %42 : f32 to vector<16x128xf32>
    %466 = arith.addf %464, %465 : vector<16x128xf32>
    %cst_131 = arith.constant 0.000000e+00 : f32
    %467 = vector.broadcast %cst_131 : f32 to vector<16x128xf32>
    %468 = arith.maximumf %466, %467 : vector<16x128xf32>
    %469 = arith.addf %453, %468 : vector<16x128xf32>
    %470 = vector.broadcast %12 : f32 to vector<16x128xf32>
    %471 = arith.mulf %413, %470 : vector<16x128xf32>
    %472 = vector.broadcast %13 : f32 to vector<16x128xf32>
    %473 = arith.mulf %416, %472 : vector<16x128xf32>
    %474 = arith.addf %471, %473 : vector<16x128xf32>
    %475 = vector.broadcast %14 : f32 to vector<16x128xf32>
    %476 = arith.mulf %419, %475 : vector<16x128xf32>
    %477 = arith.addf %474, %476 : vector<16x128xf32>
    %478 = vector.broadcast %15 : f32 to vector<16x128xf32>
    %479 = arith.mulf %422, %478 : vector<16x128xf32>
    %480 = arith.addf %477, %479 : vector<16x128xf32>
    %481 = vector.broadcast %43 : f32 to vector<16x128xf32>
    %482 = arith.addf %480, %481 : vector<16x128xf32>
    %cst_132 = arith.constant 0.000000e+00 : f32
    %483 = vector.broadcast %cst_132 : f32 to vector<16x128xf32>
    %484 = arith.maximumf %482, %483 : vector<16x128xf32>
    %485 = arith.addf %469, %484 : vector<16x128xf32>
    %486 = vector.broadcast %16 : f32 to vector<16x128xf32>
    %487 = arith.mulf %413, %486 : vector<16x128xf32>
    %488 = vector.broadcast %17 : f32 to vector<16x128xf32>
    %489 = arith.mulf %416, %488 : vector<16x128xf32>
    %490 = arith.addf %487, %489 : vector<16x128xf32>
    %491 = vector.broadcast %18 : f32 to vector<16x128xf32>
    %492 = arith.mulf %419, %491 : vector<16x128xf32>
    %493 = arith.addf %490, %492 : vector<16x128xf32>
    %494 = vector.broadcast %19 : f32 to vector<16x128xf32>
    %495 = arith.mulf %422, %494 : vector<16x128xf32>
    %496 = arith.addf %493, %495 : vector<16x128xf32>
    %497 = vector.broadcast %44 : f32 to vector<16x128xf32>
    %498 = arith.addf %496, %497 : vector<16x128xf32>
    %cst_133 = arith.constant 0.000000e+00 : f32
    %499 = vector.broadcast %cst_133 : f32 to vector<16x128xf32>
    %500 = arith.maximumf %498, %499 : vector<16x128xf32>
    %501 = arith.addf %485, %500 : vector<16x128xf32>
    %cst_134 = arith.constant 0xFF800000 : f32
    %502 = vector.broadcast %cst_134 : f32 to vector<16x128xf32>
    %c0_i32_135 = arith.constant 0 : i32
    %503 = vector.broadcast %c0_i32_135 : i32 to vector<16x128xi32>
    %c0_i32_136 = arith.constant 0 : i32
    %504 = vector.broadcast %c0_i32_136 : i32 to vector<16x128xi32>
    %505 = arith.cmpf ogt, %137, %502 : vector<16x128xf32>
    %506 = arith.cmpf ogt, %137, %502 : vector<16x128xf32>
    %507 = arith.cmpf ogt, %137, %502 : vector<16x128xf32>
    %508 = arith.select %505, %137, %502 : vector<16x128xi1>, vector<16x128xf32>
    %509 = arith.select %505, %504, %503 : vector<16x128xi1>, vector<16x128xi32>
    %510 = arith.select %506, %137, %502 : vector<16x128xi1>, vector<16x128xf32>
    %511 = arith.select %505, %502, %510 : vector<16x128xi1>, vector<16x128xf32>
    %512 = arith.select %506, %504, %503 : vector<16x128xi1>, vector<16x128xi32>
    %513 = arith.select %505, %503, %512 : vector<16x128xi1>, vector<16x128xi32>
    %514 = arith.select %507, %137, %502 : vector<16x128xi1>, vector<16x128xf32>
    %515 = arith.select %506, %502, %514 : vector<16x128xi1>, vector<16x128xf32>
    %516 = arith.select %507, %504, %503 : vector<16x128xi1>, vector<16x128xi32>
    %517 = arith.select %506, %503, %516 : vector<16x128xi1>, vector<16x128xi32>
    %c1_i32 = arith.constant 1 : i32
    %518 = vector.broadcast %c1_i32 : i32 to vector<16x128xi32>
    %519 = arith.cmpf ogt, %228, %508 : vector<16x128xf32>
    %520 = arith.cmpf ogt, %228, %511 : vector<16x128xf32>
    %521 = arith.cmpf ogt, %228, %515 : vector<16x128xf32>
    %522 = arith.select %519, %228, %508 : vector<16x128xi1>, vector<16x128xf32>
    %523 = arith.select %519, %518, %509 : vector<16x128xi1>, vector<16x128xi32>
    %524 = arith.select %520, %228, %511 : vector<16x128xi1>, vector<16x128xf32>
    %525 = arith.select %519, %508, %524 : vector<16x128xi1>, vector<16x128xf32>
    %526 = arith.select %520, %518, %513 : vector<16x128xi1>, vector<16x128xi32>
    %527 = arith.select %519, %509, %526 : vector<16x128xi1>, vector<16x128xi32>
    %528 = arith.select %521, %228, %515 : vector<16x128xi1>, vector<16x128xf32>
    %529 = arith.select %520, %511, %528 : vector<16x128xi1>, vector<16x128xf32>
    %530 = arith.select %521, %518, %517 : vector<16x128xi1>, vector<16x128xi32>
    %531 = arith.select %520, %513, %530 : vector<16x128xi1>, vector<16x128xi32>
    %c2_i32 = arith.constant 2 : i32
    %532 = vector.broadcast %c2_i32 : i32 to vector<16x128xi32>
    %533 = arith.cmpf ogt, %319, %522 : vector<16x128xf32>
    %534 = arith.cmpf ogt, %319, %525 : vector<16x128xf32>
    %535 = arith.cmpf ogt, %319, %529 : vector<16x128xf32>
    %536 = arith.select %533, %319, %522 : vector<16x128xi1>, vector<16x128xf32>
    %537 = arith.select %533, %532, %523 : vector<16x128xi1>, vector<16x128xi32>
    %538 = arith.select %534, %319, %525 : vector<16x128xi1>, vector<16x128xf32>
    %539 = arith.select %533, %522, %538 : vector<16x128xi1>, vector<16x128xf32>
    %540 = arith.select %534, %532, %527 : vector<16x128xi1>, vector<16x128xi32>
    %541 = arith.select %533, %523, %540 : vector<16x128xi1>, vector<16x128xi32>
    %542 = arith.select %535, %319, %529 : vector<16x128xi1>, vector<16x128xf32>
    %543 = arith.select %534, %525, %542 : vector<16x128xi1>, vector<16x128xf32>
    %544 = arith.select %535, %532, %531 : vector<16x128xi1>, vector<16x128xi32>
    %545 = arith.select %534, %527, %544 : vector<16x128xi1>, vector<16x128xi32>
    %c3_i32 = arith.constant 3 : i32
    %546 = vector.broadcast %c3_i32 : i32 to vector<16x128xi32>
    %547 = arith.cmpf ogt, %410, %536 : vector<16x128xf32>
    %548 = arith.cmpf ogt, %410, %539 : vector<16x128xf32>
    %549 = arith.cmpf ogt, %410, %543 : vector<16x128xf32>
    %550 = arith.select %547, %410, %536 : vector<16x128xi1>, vector<16x128xf32>
    %551 = arith.select %547, %546, %537 : vector<16x128xi1>, vector<16x128xi32>
    %552 = arith.select %548, %410, %539 : vector<16x128xi1>, vector<16x128xf32>
    %553 = arith.select %547, %536, %552 : vector<16x128xi1>, vector<16x128xf32>
    %554 = arith.select %548, %546, %541 : vector<16x128xi1>, vector<16x128xi32>
    %555 = arith.select %547, %537, %554 : vector<16x128xi1>, vector<16x128xi32>
    %556 = arith.select %549, %410, %543 : vector<16x128xi1>, vector<16x128xf32>
    %557 = arith.select %548, %539, %556 : vector<16x128xi1>, vector<16x128xf32>
    %558 = arith.select %549, %546, %545 : vector<16x128xi1>, vector<16x128xi32>
    %559 = arith.select %548, %541, %558 : vector<16x128xi1>, vector<16x128xi32>
    %c4_i32 = arith.constant 4 : i32
    %560 = vector.broadcast %c4_i32 : i32 to vector<16x128xi32>
    %561 = arith.cmpf ogt, %501, %550 : vector<16x128xf32>
    %562 = arith.cmpf ogt, %501, %553 : vector<16x128xf32>
    %563 = arith.cmpf ogt, %501, %557 : vector<16x128xf32>
    %564 = arith.select %561, %501, %550 : vector<16x128xi1>, vector<16x128xf32>
    %565 = arith.select %561, %560, %551 : vector<16x128xi1>, vector<16x128xi32>
    %566 = arith.select %562, %501, %553 : vector<16x128xi1>, vector<16x128xf32>
    %567 = arith.select %561, %550, %566 : vector<16x128xi1>, vector<16x128xf32>
    %568 = arith.select %562, %560, %555 : vector<16x128xi1>, vector<16x128xi32>
    %569 = arith.select %561, %551, %568 : vector<16x128xi1>, vector<16x128xi32>
    %570 = arith.select %563, %501, %557 : vector<16x128xi1>, vector<16x128xf32>
    %571 = arith.select %562, %553, %570 : vector<16x128xi1>, vector<16x128xf32>
    %572 = arith.select %563, %560, %559 : vector<16x128xi1>, vector<16x128xi32>
    %573 = arith.select %562, %555, %572 : vector<16x128xi1>, vector<16x128xi32>
    %c0_137 = arith.constant 0 : index
    %574 = arith.index_cast %46 : i32 to index
    %c0_138 = arith.constant 0 : index
    %575 = vector.load %arg4[%c0_137, %574, %c0_138] : memref<3x16x128xf32, #tpu.memory_space<vmem>>, vector<1x16x128xf32>
    %576 = vector.shape_cast %575 : vector<1x16x128xf32> to vector<16x128xf32>
    %577 = vector.shape_cast %564 : vector<16x128xf32> to vector<1x16x128xf32>
    tpu.vector_store %arg4[%c0_137, %574, %c0_138], %577 {strides = array<i32>} : memref<3x16x128xf32, #tpu.memory_space<vmem>>, vector<1x16x128xf32>,
    %c1_139 = arith.constant 1 : index
    %578 = arith.index_cast %46 : i32 to index
    %c0_140 = arith.constant 0 : index
    %579 = vector.load %arg4[%c1_139, %578, %c0_140] : memref<3x16x128xf32, #tpu.memory_space<vmem>>, vector<1x16x128xf32>
    %580 = vector.shape_cast %579 : vector<1x16x128xf32> to vector<16x128xf32>
    %581 = vector.shape_cast %567 : vector<16x128xf32> to vector<1x16x128xf32>
    tpu.vector_store %arg4[%c1_139, %578, %c0_140], %581 {strides = array<i32>} : memref<3x16x128xf32, #tpu.memory_space<vmem>>, vector<1x16x128xf32>,
    %c2_141 = arith.constant 2 : index
    %582 = arith.index_cast %46 : i32 to index
    %c0_142 = arith.constant 0 : index
    %583 = vector.load %arg4[%c2_141, %582, %c0_142] : memref<3x16x128xf32, #tpu.memory_space<vmem>>, vector<1x16x128xf32>
    %584 = vector.shape_cast %583 : vector<1x16x128xf32> to vector<16x128xf32>
    %585 = vector.shape_cast %571 : vector<16x128xf32> to vector<1x16x128xf32>
    tpu.vector_store %arg4[%c2_141, %582, %c0_142], %585 {strides = array<i32>} : memref<3x16x128xf32, #tpu.memory_space<vmem>>, vector<1x16x128xf32>,
    %c0_143 = arith.constant 0 : index
    %586 = arith.index_cast %46 : i32 to index
    %c0_144 = arith.constant 0 : index
    %587 = vector.load %arg5[%c0_143, %586, %c0_144] : memref<3x16x128xi32, #tpu.memory_space<vmem>>, vector<1x16x128xi32>
    %588 = vector.shape_cast %587 : vector<1x16x128xi32> to vector<16x128xi32>
    %589 = vector.shape_cast %565 : vector<16x128xi32> to vector<1x16x128xi32>
    tpu.vector_store %arg5[%c0_143, %586, %c0_144], %589 {strides = array<i32>} : memref<3x16x128xi32, #tpu.memory_space<vmem>>, vector<1x16x128xi32>,
    %c1_145 = arith.constant 1 : index
    %590 = arith.index_cast %46 : i32 to index
    %c0_146 = arith.constant 0 : index
    %591 = vector.load %arg5[%c1_145, %590, %c0_146] : memref<3x16x128xi32, #tpu.memory_space<vmem>>, vector<1x16x128xi32>
    %592 = vector.shape_cast %591 : vector<1x16x128xi32> to vector<16x128xi32>
    %593 = vector.shape_cast %569 : vector<16x128xi32> to vector<1x16x128xi32>
    tpu.vector_store %arg5[%c1_145, %590, %c0_146], %593 {strides = array<i32>} : memref<3x16x128xi32, #tpu.memory_space<vmem>>, vector<1x16x128xi32>,
    %c2_147 = arith.constant 2 : index
    %594 = arith.index_cast %46 : i32 to index
    %c0_148 = arith.constant 0 : index
    %595 = vector.load %arg5[%c2_147, %594, %c0_148] : memref<3x16x128xi32, #tpu.memory_space<vmem>>, vector<1x16x128xi32>
    %596 = vector.shape_cast %595 : vector<1x16x128xi32> to vector<16x128xi32>
    %597 = vector.shape_cast %573 : vector<16x128xi32> to vector<1x16x128xi32>
    tpu.vector_store %arg5[%c2_147, %594, %c0_148], %597 {strides = array<i32>} : memref<3x16x128xi32, #tpu.memory_space<vmem>>, vector<1x16x128xi32>,
    %c1_i32_149 = arith.constant 1 : i32
    return
  }
  func.func @transform_0(%arg0: i32) -> (i32, i32, i32) {
    %c0_i32 = arith.constant 0 : i32
    %c0_i32_0 = arith.constant 0 : i32
    %c0_i32_1 = arith.constant 0 : i32
    return %c0_i32, %arg0, %c0_i32_0 : i32, i32, i32
  }
  func.func @transform_1(%arg0: i32) -> (i32, i32) {
    %c0_i32 = arith.constant 0 : i32
    %c0_i32_0 = arith.constant 0 : i32
    %c0_i32_1 = arith.constant 0 : i32
    return %c0_i32, %c0_i32_0 : i32, i32
  }
  func.func @transform_2(%arg0: i32) -> (i32, i32) {
    %c0_i32 = arith.constant 0 : i32
    %c0_i32_0 = arith.constant 0 : i32
    %c0_i32_1 = arith.constant 0 : i32
    return %c0_i32, %c0_i32_0 : i32, i32
  }
  func.func @transform_3(%arg0: i32) -> (i32, i32, i32) {
    %c0_i32 = arith.constant 0 : i32
    %c0_i32_0 = arith.constant 0 : i32
    %c0_i32_1 = arith.constant 0 : i32
    return %c0_i32, %arg0, %c0_i32_0 : i32, i32, i32
  }
  func.func @transform_4(%arg0: i32) -> (i32, i32, i32) {
    %c0_i32 = arith.constant 0 : i32
    %c0_i32_0 = arith.constant 0 : i32
    %c0_i32_1 = arith.constant 0 : i32
    return %c0_i32, %arg0, %c0_i32_0 : i32, i32, i32
  }
}

</mosaic_0001>

<llo_original>
// kernel: tpu_custom_call.1
$region0: #{tpu_custom_call.1}
  #allocation0 [shape = 'u32[]', space=smem, size = 0x4, offset = 0x4, fixed_abs, tag = 'smem constant byte address 0x4 - core index']
  #allocation1 [shape = 'u32[144,128]{1,0:T(1,128)}', space=vmem, size = 0x12000, scoped, tag = 'internal scratch']
  %s0 = inlined_call_operand.hbm [shape: f32[20,16,128], index: 0, kind: input, shape index: {}]
  %s1 = inlined_call_operand.vmem [shape: f32[5,4], index: 1, kind: input, shape index: {}]
  %s2 = inlined_call_operand.vmem [shape: f32[5,5], index: 2, kind: input, shape index: {}]
  %s3 = inlined_call_operand.hbm [shape: f32[3,16,128], index: 3, kind: output, shape index: {0}]
  %s4 = inlined_call_operand.hbm [shape: s32[3,16,128], index: 4, kind: output, shape index: {1}]
  %5 = xla_tuple %s3, %s4
  %s6 = sld [smem:[#allocation0]]
  $region42: #{tpu_custom_call.1} parent=0
    _
  %s8 = ssub.s32 1, %s6
  %s9 = scalar_select 0, %s8, %s6
  $region1: #{tpu_custom_call.1} parent=0
    #allocation2 [shape = 'u8[163840]{0}', space=vmem, size = 0x28000, scoped, tag = 'input window, operand 0, single buffered']
    #allocation3 [shape = 's32[1]{0}', space=sflag, size = 0x4, scoped, tag = 'scoped memory for tpu_custom_call.1']
    #allocation4 [shape = 's32[1]{0}', space=sflag, size = 0x4, scoped, tag = 'scoped memory for tpu_custom_call.1']
    #allocation5 [shape = 's32[1]{0}', space=sflag, size = 0x4, scoped, tag = 'scoped memory for tpu_custom_call.1']
    #allocation6 [shape = 'u8[4096]{0}', space=smem, size = 0x1000, scoped, tag = 'input window, operand 1, single buffered']
    #allocation7 [shape = 'u8[4096]{0}', space=smem, size = 0x1000, scoped, tag = 'input window, operand 2, single buffered']
    #allocation8 [shape = 's32[1]{0}', space=sflag, size = 0x4, scoped, tag = 'scoped memory for tpu_custom_call.1']
    #allocation9 [shape = 'u8[24576]{0}', space=vmem, size = 0x6000, scoped, tag = 'output window, operand 0, single buffered']
    #allocation10 [shape = 'u8[24576]{0}', space=vmem, size = 0x6000, scoped, tag = 'output window, operand 1, single buffered']
    #allocation11 [shape = 's32[1]{0}', space=sflag, size = 0x4, scoped, tag = 'scoped memory for tpu_custom_call.1']
    %10 = vsyncpa [#allocation3], 0
    %11 = vsyncpa [#allocation5], 0
    %12 = vsyncpa [#allocation8], 0
    %13 = vsyncpa [#allocation4], 0
    %14 = vsyncpa [#allocation11], 0
    // Predicated region
    $region2: #{tpu_custom_call.1} parent=1 // pred_check
      _
    $region3: #{tpu_custom_call.1} parent=1 // pred_check_branch
      %16 = sbr.rel (0) target = $region5
    $region4: #{tpu_custom_call.1} parent=1 // pred_region
      %s18 = ssub.s32 5120, 5120
      %19 = vsyncadd [#allocation3], %s18
      %s20 = sshll.u32 [#allocation2], 4
      %s21 = int_to_ptr.vmem [resolvable:$true] %s20
      %26 = dma.hbm_to_vmem [thread:$0]  %s0, 5120, %s21, [#allocation3], 128, 128, 8
    $region5: #{tpu_custom_call.1} parent=1 // pred_fallthru
      _
    // Predicated region
    $region6: #{tpu_custom_call.1} parent=1 // pred_check
      _
    $region7: #{tpu_custom_call.1} parent=1 // pred_check_branch
      %28 = sbr.rel (0) target = $region9
    $region8: #{tpu_custom_call.1} parent=1 // pred_region
      %s30 = ssub.s32 128, 128
      %31 = vsyncadd [#allocation5], %s30
      %s33 = sshll.u32 %s1, 4
      %s34 = int_to_ptr.vmem [resolvable:$true] %s33
      %36 = dma.vmem_to_smem %s34, 128, [#allocation6], [#allocation5]
    $region9: #{tpu_custom_call.1} parent=1 // pred_fallthru
      _
    // Predicated region
    $region10: #{tpu_custom_call.1} parent=1 // pred_check
      _
    $region11: #{tpu_custom_call.1} parent=1 // pred_check_branch
      %38 = sbr.rel (0) target = $region13
    $region12: #{tpu_custom_call.1} parent=1 // pred_region
      %s40 = ssub.s32 128, 128
      %41 = vsyncadd [#allocation8], %s40
      %s43 = sshll.u32 %s2, 4
      %s44 = int_to_ptr.vmem [resolvable:$true] %s43
      %46 = dma.vmem_to_smem %s44, 128, [#allocation7], [#allocation8]
    $region13: #{tpu_custom_call.1} parent=1 // pred_fallthru
      _
    // Predicated region
    $region14: #{tpu_custom_call.1} parent=1 // pred_check
      _
    $region15: #{tpu_custom_call.1} parent=1 // pred_check_branch
      %48 = sbr.rel (0) target = $region17
    $region16: #{tpu_custom_call.1} parent=1 // pred_region
      %49 = dma.done [#allocation3], 5120
    $region17: #{tpu_custom_call.1} parent=1 // pred_fallthru
      _
    // Predicated region
    $region18: #{tpu_custom_call.1} parent=1 // pred_check
      _
    $region19: #{tpu_custom_call.1} parent=1 // pred_check_branch
      %51 = sbr.rel (0) target = $region21
    $region20: #{tpu_custom_call.1} parent=1 // pred_region
      %52 = dma.done [#allocation5], 128
    $region21: #{tpu_custom_call.1} parent=1 // pred_fallthru
      _
    // Predicated region
    $region22: #{tpu_custom_call.1} parent=1 // pred_check
      _
    $region23: #{tpu_custom_call.1} parent=1 // pred_check_branch
      %54 = sbr.rel (0) target = $region25
    $region24: #{tpu_custom_call.1} parent=1 // pred_region
      %55 = dma.done [#allocation8], 128
    $region25: #{tpu_custom_call.1} parent=1 // pred_fallthru
      _
    %56 = sfence
    %s57 = sld [smem:[#allocation6]]
    %s58 = sld [smem:[#allocation6 + $0x1]]
    %s59 = sld [smem:[#allocation6 + $0x2]]
    %s60 = sld [smem:[#allocation6 + $0x3]]
    %s61 = sld [smem:[#allocation6 + $0x80]]
    %s62 = sld [smem:[#allocation6 + $0x81]]
    %s63 = sld [smem:[#allocation6 + $0x82]]
    %s64 = sld [smem:[#allocation6 + $0x83]]
    %s65 = sld [smem:[#allocation6 + $0x100]]
    %s66 = sld [smem:[#allocation6 + $0x101]]
    %s67 = sld [smem:[#allocation6 + $0x102]]
    %s68 = sld [smem:[#allocation6 + $0x103]]
    %s69 = sld [smem:[#allocation6 + $0x180]]
    %s70 = sld [smem:[#allocation6 + $0x181]]
    %s71 = sld [smem:[#allocation6 + $0x182]]
    %s72 = sld [smem:[#allocation6 + $0x183]]
    %s73 = sld [smem:[#allocation6 + $0x200]]
    %s74 = sld [smem:[#allocation6 + $0x201]]
    %s75 = sld [smem:[#allocation6 + $0x202]]
    %s76 = sld [smem:[#allocation6 + $0x203]]
    %s77 = sld [smem:[#allocation7]]
    %s78 = sld [smem:[#allocation7 + $0x1]]
    %s79 = sld [smem:[#allocation7 + $0x2]]
    %s80 = sld [smem:[#allocation7 + $0x3]]
    %s81 = sld [smem:[#allocation7 + $0x4]]
    %s82 = sld [smem:[#allocation7 + $0x80]]
    %s83 = sld [smem:[#allocation7 + $0x81]]
    %s84 = sld [smem:[#allocation7 + $0x82]]
    %s85 = sld [smem:[#allocation7 + $0x83]]
    %s86 = sld [smem:[#allocation7 + $0x84]]
    %s87 = sld [smem:[#allocation7 + $0x100]]
    %s88 = sld [smem:[#allocation7 + $0x101]]
    %s89 = sld [smem:[#allocation7 + $0x102]]
    %s90 = sld [smem:[#allocation7 + $0x103]]
    %s91 = sld [smem:[#allocation7 + $0x104]]
    %s92 = sld [smem:[#allocation7 + $0x180]]
    %s93 = sld [smem:[#allocation7 + $0x181]]
    %s94 = sld [smem:[#allocation7 + $0x182]]
    %s95 = sld [smem:[#allocation7 + $0x183]]
    %s96 = sld [smem:[#allocation7 + $0x184]]
    %s97 = sld [smem:[#allocation7 + $0x200]]
    %s98 = sld [smem:[#allocation7 + $0x201]]
    %s99 = sld [smem:[#allocation7 + $0x202]]
    %s100 = sld [smem:[#allocation7 + $0x203]]
    %s101 = sld [smem:[#allocation7 + $0x204]]
    %v102 = vld [vmem:[#allocation2] sm:$0xff]
    %v103 = vld [vmem:[#allocation2 + $0x8] sm:$0xff]
    %s104 = sadd.s32 0, 16
    %s105 = scalar_lea.vmem [#allocation2], %s104
    %v106 = vld [vmem:[%s105] sm:$0xff]
    %v107 = vld [vmem:[%s105 + $0x8] sm:$0xff]
    %s108 = sadd.s32 0, 32
    %s109 = scalar_lea.vmem [#allocation2], %s108
    %v110 = vld [vmem:[%s109] sm:$0xff]
    %v111 = vld [vmem:[%s109 + $0x8] sm:$0xff]
    %s112 = sadd.s32 0, 48
    %s113 = scalar_lea.vmem [#allocation2], %s112
    %v114 = vld [vmem:[%s113] sm:$0xff]
    %v115 = vld [vmem:[%s113 + $0x8] sm:$0xff]
    %v116 = vstv %s57
    %v117 = vmul.f32 %v102, %v116
    %v118 = vmul.f32 %v103, %v116
    %v119 = vstv %s58
    %v120 = vmul.f32 %v106, %v119
    %v121 = vmul.f32 %v107, %v119
    %v122 = vadd.f32 %v117, %v120
    %v123 = vadd.f32 %v118, %v121
    %v124 = vstv %s59
    %v125 = vmul.f32 %v110, %v124
    %v126 = vmul.f32 %v111, %v124
    %v127 = vadd.f32 %v122, %v125
    %v128 = vadd.f32 %v123, %v126
    %v129 = vstv %s60
    %v130 = vmul.f32 %v114, %v129
    %v131 = vmul.f32 %v115, %v129
    %v132 = vadd.f32 %v127, %v130
    %v133 = vadd.f32 %v128, %v131
    %v134 = vstv %s77
    %v135 = vadd.f32 %v132, %v134
    %v136 = vadd.f32 %v133, %v134
    %v137 = vmax.f32 %v135, 0.0
    %v138 = vmax.f32 %v136, 0.0
    %v139 = vstv %s61
    %v140 = vmul.f32 %v102, %v139
    %v141 = vmul.f32 %v103, %v139
    %v142 = vstv %s62
    %v143 = vmul.f32 %v106, %v142
    %v144 = vmul.f32 %v107, %v142
    %v145 = vadd.f32 %v140, %v143
    %v146 = vadd.f32 %v141, %v144
    %v147 = vstv %s63
    %v148 = vmul.f32 %v110, %v147
    %v149 = vmul.f32 %v111, %v147
    %v150 = vadd.f32 %v145, %v148
    %v151 = vadd.f32 %v146, %v149
    %v152 = vstv %s64
    %v153 = vmul.f32 %v114, %v152
    %v154 = vmul.f32 %v115, %v152
    %v155 = vadd.f32 %v150, %v153
    %v156 = vadd.f32 %v151, %v154
    %v157 = vstv %s78
    %v158 = vadd.f32 %v155, %v157
    %v159 = vadd.f32 %v156, %v157
    %v160 = vmax.f32 %v158, 0.0
    %v161 = vmax.f32 %v159, 0.0
    %v162 = vadd.f32 %v137, %v160
    %v163 = vadd.f32 %v138, %v161
    %v164 = vstv %s65
    %v165 = vmul.f32 %v102, %v164
    %v166 = vmul.f32 %v103, %v164
    %v167 = vstv %s66
    %v168 = vmul.f32 %v106, %v167
    %v169 = vmul.f32 %v107, %v167
    %v170 = vadd.f32 %v165, %v168
    %v171 = vadd.f32 %v166, %v169
    %v172 = vstv %s67
    %v173 = vmul.f32 %v110, %v172
    %v174 = vmul.f32 %v111, %v172
    %v175 = vadd.f32 %v170, %v173
    %v176 = vadd.f32 %v171, %v174
    %v177 = vstv %s68
    %v178 = vmul.f32 %v114, %v177
    %v179 = vmul.f32 %v115, %v177
    %v180 = vadd.f32 %v175, %v178
    %v181 = vadd.f32 %v176, %v179
    %v182 = vstv %s79
    %v183 = vadd.f32 %v180, %v182
    %v184 = vadd.f32 %v181, %v182
    %v185 = vmax.f32 %v183, 0.0
    %v186 = vmax.f32 %v184, 0.0
    %v187 = vadd.f32 %v162, %v185
    %v188 = vadd.f32 %v163, %v186
    %v189 = vstv %s69
    %v190 = vmul.f32 %v102, %v189
    %v191 = vmul.f32 %v103, %v189
    %v192 = vstv %s70
    %v193 = vmul.f32 %v106, %v192
    %v194 = vmul.f32 %v107, %v192
    %v195 = vadd.f32 %v190, %v193
    %v196 = vadd.f32 %v191, %v194
    %v197 = vstv %s71
    %v198 = vmul.f32 %v110, %v197
    %v199 = vmul.f32 %v111, %v197
    %v200 = vadd.f32 %v195, %v198
    %v201 = vadd.f32 %v196, %v199
    %v202 = vstv %s72
    %v203 = vmul.f32 %v114, %v202
    %v204 = vmul.f32 %v115, %v202
    %v205 = vadd.f32 %v200, %v203
    %v206 = vadd.f32 %v201, %v204
    %v207 = vstv %s80
    %v208 = vadd.f32 %v205, %v207
    %v209 = vadd.f32 %v206, %v207
    %v210 = vmax.f32 %v208, 0.0
    %v211 = vmax.f32 %v209, 0.0
    %v212 = vadd.f32 %v187, %v210
    %v213 = vadd.f32 %v188, %v211
    %v214 = vstv %s73
    %v215 = vmul.f32 %v102, %v214
    %v216 = vmul.f32 %v103, %v214
    %v217 = vstv %s74
    %v218 = vmul.f32 %v106, %v217
    %v219 = vmul.f32 %v107, %v217
    %v220 = vadd.f32 %v215, %v218
    %v221 = vadd.f32 %v216, %v219
    %v222 = vstv %s75
    %v223 = vmul.f32 %v110, %v222
    %v224 = vmul.f32 %v111, %v222
    %v225 = vadd.f32 %v220, %v223
    %v226 = vadd.f32 %v221, %v224
    %v227 = vstv %s76
    %v228 = vmul.f32 %v114, %v227
    %v229 = vmul.f32 %v115, %v227
    %v230 = vadd.f32 %v225, %v228
    %v231 = vadd.f32 %v226, %v229
    %v232 = vstv %s81
    %v233 = vadd.f32 %v230, %v232
    %v234 = vadd.f32 %v231, %v232
    %v235 = vmax.f32 %v233, 0.0
    %v236 = vmax.f32 %v234, 0.0
    %v237 = vadd.f32 %v212, %v235
    %v238 = vadd.f32 %v213, %v236
    %s239 = sadd.s32 0, 64
    %s240 = scalar_lea.vmem [#allocation2], %s239
    %v241 = vld [vmem:[%s240] sm:$0xff]
    %v242 = vld [vmem:[%s240 + $0x8] sm:$0xff]
    %s243 = sadd.s32 0, 80
    %s244 = scalar_lea.vmem [#allocation2], %s243
    %v245 = vld [vmem:[%s244] sm:$0xff]
    %v246 = vld [vmem:[%s244 + $0x8] sm:$0xff]
    %s247 = sadd.s32 0, 96
    %s248 = scalar_lea.vmem [#allocation2], %s247
    %v249 = vld [vmem:[%s248] sm:$0xff]
    %v250 = vld [vmem:[%s248 + $0x8] sm:$0xff]
    %s251 = sadd.s32 0, 112
    %s252 = scalar_lea.vmem [#allocation2], %s251
    %v253 = vld [vmem:[%s252] sm:$0xff]
    %v254 = vld [vmem:[%s252 + $0x8] sm:$0xff]
    %v255 = vmul.f32 %v241, %v116
    %v256 = vmul.f32 %v242, %v116
    %v257 = vmul.f32 %v245, %v119
    %v258 = vmul.f32 %v246, %v119
    %v259 = vadd.f32 %v255, %v257
    %v260 = vadd.f32 %v256, %v258
    %v261 = vmul.f32 %v249, %v124
    %v262 = vmul.f32 %v250, %v124
    %v263 = vadd.f32 %v259, %v261
    %v264 = vadd.f32 %v260, %v262
    %v265 = vmul.f32 %v253, %v129
    %v266 = vmul.f32 %v254, %v129
    %v267 = vadd.f32 %v263, %v265
    %v268 = vadd.f32 %v264, %v266
    %v269 = vstv %s82
    %v270 = vadd.f32 %v267, %v269
    %v271 = vadd.f32 %v268, %v269
    %v272 = vmax.f32 %v270, 0.0
    %v273 = vmax.f32 %v271, 0.0
    %v274 = vmul.f32 %v241, %v139
    %v275 = vmul.f32 %v242, %v139
    %v276 = vmul.f32 %v245, %v142
    %v277 = vmul.f32 %v246, %v142
    %v278 = vadd.f32 %v274, %v276
    %v279 = vadd.f32 %v275, %v277
    %v280 = vmul.f32 %v249, %v147
    %v281 = vmul.f32 %v250, %v147
    %v282 = vadd.f32 %v278, %v280
    %v283 = vadd.f32 %v279, %v281
    %v284 = vmul.f32 %v253, %v152
    %v285 = vmul.f32 %v254, %v152
    %v286 = vadd.f32 %v282, %v284
    %v287 = vadd.f32 %v283, %v285
    %v288 = vstv %s83
    %v289 = vadd.f32 %v286, %v288
    %v290 = vadd.f32 %v287, %v288
    %v291 = vmax.f32 %v289, 0.0
    %v292 = vmax.f32 %v290, 0.0
    %v293 = vadd.f32 %v272, %v291
    %v294 = vadd.f32 %v273, %v292
    %v295 = vmul.f32 %v241, %v164
    %v296 = vmul.f32 %v242, %v164
    %v297 = vmul.f32 %v245, %v167
    %v298 = vmul.f32 %v246, %v167
    %v299 = vadd.f32 %v295, %v297
    %v300 = vadd.f32 %v296, %v298
    %v301 = vmul.f32 %v249, %v172
    %v302 = vmul.f32 %v250, %v172
    %v303 = vadd.f32 %v299, %v301
    %v304 = vadd.f32 %v300, %v302
    %v305 = vmul.f32 %v253, %v177
    %v306 = vmul.f32 %v254, %v177
    %v307 = vadd.f32 %v303, %v305
    %v308 = vadd.f32 %v304, %v306
    %v309 = vstv %s84
    %v310 = vadd.f32 %v307, %v309
    %v311 = vadd.f32 %v308, %v309
    %v312 = vmax.f32 %v310, 0.0
    %v313 = vmax.f32 %v311, 0.0
    %v314 = vadd.f32 %v293, %v312
    %v315 = vadd.f32 %v294, %v313
    %v316 = vmul.f32 %v241, %v189
    %v317 = vmul.f32 %v242, %v189
    %v318 = vmul.f32 %v245, %v192
    %v319 = vmul.f32 %v246, %v192
    %v320 = vadd.f32 %v316, %v318
    %v321 = vadd.f32 %v317, %v319
    %v322 = vmul.f32 %v249, %v197
    %v323 = vmul.f32 %v250, %v197
    %v324 = vadd.f32 %v320, %v322
    %v325 = vadd.f32 %v321, %v323
    %v326 = vmul.f32 %v253, %v202
    %v327 = vmul.f32 %v254, %v202
    %v328 = vadd.f32 %v324, %v326
    %v329 = vadd.f32 %v325, %v327
    %v330 = vstv %s85
    %v331 = vadd.f32 %v328, %v330
    %v332 = vadd.f32 %v329, %v330
    %v333 = vmax.f32 %v331, 0.0
    %v334 = vmax.f32 %v332, 0.0
    %v335 = vadd.f32 %v314, %v333
    %v336 = vadd.f32 %v315, %v334
    %v337 = vmul.f32 %v241, %v214
    %v338 = vmul.f32 %v242, %v214
    %v339 = vmul.f32 %v245, %v217
    %v340 = vmul.f32 %v246, %v217
    %v341 = vadd.f32 %v337, %v339
    %v342 = vadd.f32 %v338, %v340
    %v343 = vmul.f32 %v249, %v222
    %v344 = vmul.f32 %v250, %v222
    %v345 = vadd.f32 %v341, %v343
    %v346 = vadd.f32 %v342, %v344
    %v347 = vmul.f32 %v253, %v227
    %v348 = vmul.f32 %v254, %v227
    %v349 = vadd.f32 %v345, %v347
    %v350 = vadd.f32 %v346, %v348
    %v351 = vstv %s86
    %v352 = vadd.f32 %v349, %v351
    %v353 = vadd.f32 %v350, %v351
    %v354 = vmax.f32 %v352, 0.0
    %v355 = vmax.f32 %v353, 0.0
    %v356 = vadd.f32 %v335, %v354
    %v357 = vadd.f32 %v336, %v355
    %s358 = sadd.s32 0, 128
    %s359 = scalar_lea.vmem [#allocation2], %s358
    %v360 = vld [vmem:[%s359] sm:$0xff]
    %v361 = vld [vmem:[%s359 + $0x8] sm:$0xff]
    %s362 = sadd.s32 0, 144
    %s363 = scalar_lea.vmem [#allocation2], %s362
    %v364 = vld [vmem:[%s363] sm:$0xff]
    %v365 = vld [vmem:[%s363 + $0x8] sm:$0xff]
    %s366 = sadd.s32 0, 160
    %s367 = scalar_lea.vmem [#allocation2], %s366
    %v368 = vld [vmem:[%s367] sm:$0xff]
    %v369 = vld [vmem:[%s367 + $0x8] sm:$0xff]
    %s370 = sadd.s32 0, 176
    %s371 = scalar_lea.vmem [#allocation2], %s370
    %v372 = vld [vmem:[%s371] sm:$0xff]
    %v373 = vld [vmem:[%s371 + $0x8] sm:$0xff]
    %v374 = vmul.f32 %v360, %v116
    %v375 = vmul.f32 %v361, %v116
    %v376 = vmul.f32 %v364, %v119
    %v377 = vmul.f32 %v365, %v119
    %v378 = vadd.f32 %v374, %v376
    %v379 = vadd.f32 %v375, %v377
    %v380 = vmul.f32 %v368, %v124
    %v381 = vmul.f32 %v369, %v124
    %v382 = vadd.f32 %v378, %v380
    %v383 = vadd.f32 %v379, %v381
    %v384 = vmul.f32 %v372, %v129
    %v385 = vmul.f32 %v373, %v129
    %v386 = vadd.f32 %v382, %v384
    %v387 = vadd.f32 %v383, %v385
    %v388 = vstv %s87
    %v389 = vadd.f32 %v386, %v388
    %v390 = vadd.f32 %v387, %v388
    %v391 = vmax.f32 %v389, 0.0
    %v392 = vmax.f32 %v390, 0.0
    %v393 = vmul.f32 %v360, %v139
    %v394 = vmul.f32 %v361, %v139
    %v395 = vmul.f32 %v364, %v142
    %v396 = vmul.f32 %v365, %v142
    %v397 = vadd.f32 %v393, %v395
    %v398 = vadd.f32 %v394, %v396
    %v399 = vmul.f32 %v368, %v147
    %v400 = vmul.f32 %v369, %v147
    %v401 = vadd.f32 %v397, %v399
    %v402 = vadd.f32 %v398, %v400
    %v403 = vmul.f32 %v372, %v152
    %v404 = vmul.f32 %v373, %v152
    %v405 = vadd.f32 %v401, %v403
    %v406 = vadd.f32 %v402, %v404
    %v407 = vstv %s88
    %v408 = vadd.f32 %v405, %v407
    %v409 = vadd.f32 %v406, %v407
    %v410 = vmax.f32 %v408, 0.0
    %v411 = vmax.f32 %v409, 0.0
    %v412 = vadd.f32 %v391, %v410
    %v413 = vadd.f32 %v392, %v411
    %v414 = vmul.f32 %v360, %v164
    %v415 = vmul.f32 %v361, %v164
    %v416 = vmul.f32 %v364, %v167
    %v417 = vmul.f32 %v365, %v167
    %v418 = vadd.f32 %v414, %v416
    %v419 = vadd.f32 %v415, %v417
    %v420 = vmul.f32 %v368, %v172
    %v421 = vmul.f32 %v369, %v172
    %v422 = vadd.f32 %v418, %v420
    %v423 = vadd.f32 %v419, %v421
    %v424 = vmul.f32 %v372, %v177
    %v425 = vmul.f32 %v373, %v177
    %v426 = vadd.f32 %v422, %v424
    %v427 = vadd.f32 %v423, %v425
    %v428 = vstv %s89
    %v429 = vadd.f32 %v426, %v428
    %v430 = vadd.f32 %v427, %v428
    %v431 = vmax.f32 %v429, 0.0
    %v432 = vmax.f32 %v430, 0.0
    %v433 = vadd.f32 %v412, %v431
    %v434 = vadd.f32 %v413, %v432
    %v435 = vmul.f32 %v360, %v189
    %v436 = vmul.f32 %v361, %v189
    %v437 = vmul.f32 %v364, %v192
    %v438 = vmul.f32 %v365, %v192
    %v439 = vadd.f32 %v435, %v437
    %v440 = vadd.f32 %v436, %v438
    %v441 = vmul.f32 %v368, %v197
    %v442 = vmul.f32 %v369, %v197
    %v443 = vadd.f32 %v439, %v441
    %v444 = vadd.f32 %v440, %v442
    %v445 = vmul.f32 %v372, %v202
    %v446 = vmul.f32 %v373, %v202
    %v447 = vadd.f32 %v443, %v445
    %v448 = vadd.f32 %v444, %v446
    %v449 = vstv %s90
    %v450 = vadd.f32 %v447, %v449
    %v451 = vadd.f32 %v448, %v449
    %v452 = vmax.f32 %v450, 0.0
    %v453 = vmax.f32 %v451, 0.0
    %v454 = vadd.f32 %v433, %v452
    %v455 = vadd.f32 %v434, %v453
    %v456 = vmul.f32 %v360, %v214
    %v457 = vmul.f32 %v361, %v214
    %v458 = vmul.f32 %v364, %v217
    %v459 = vmul.f32 %v365, %v217
    %v460 = vadd.f32 %v456, %v458
    %v461 = vadd.f32 %v457, %v459
    %v462 = vmul.f32 %v368, %v222
    %v463 = vmul.f32 %v369, %v222
    %v464 = vadd.f32 %v460, %v462
    %v465 = vadd.f32 %v461, %v463
    %v466 = vmul.f32 %v372, %v227
    %v467 = vmul.f32 %v373, %v227
    %v468 = vadd.f32 %v464, %v466
    %v469 = vadd.f32 %v465, %v467
    %v470 = vstv %s91
    %v471 = vadd.f32 %v468, %v470
    %v472 = vadd.f32 %v469, %v470
    %v473 = vmax.f32 %v471, 0.0
    %v474 = vmax.f32 %v472, 0.0
    %v475 = vadd.f32 %v454, %v473
    %v476 = vadd.f32 %v455, %v474
    %s477 = sadd.s32 0, 192
    %s478 = scalar_lea.vmem [#allocation2], %s477
    %v479 = vld [vmem:[%s478] sm:$0xff]
    %v480 = vld [vmem:[%s478 + $0x8] sm:$0xff]
    %s481 = sadd.s32 0, 208
    %s482 = scalar_lea.vmem [#allocation2], %s481
    %v483 = vld [vmem:[%s482] sm:$0xff]
    %v484 = vld [vmem:[%s482 + $0x8] sm:$0xff]
    %s485 = sadd.s32 0, 224
    %s486 = scalar_lea.vmem [#allocation2], %s485
    %v487 = vld [vmem:[%s486] sm:$0xff]
    %v488 = vld [vmem:[%s486 + $0x8] sm:$0xff]
    %s489 = sadd.s32 0, 240
    %s490 = scalar_lea.vmem [#allocation2], %s489
    %v491 = vld [vmem:[%s490] sm:$0xff]
    %v492 = vld [vmem:[%s490 + $0x8] sm:$0xff]
    %v493 = vmul.f32 %v479, %v116
    %v494 = vmul.f32 %v480, %v116
    %v495 = vmul.f32 %v483, %v119
    %v496 = vmul.f32 %v484, %v119
    %v497 = vadd.f32 %v493, %v495
    %v498 = vadd.f32 %v494, %v496
    %v499 = vmul.f32 %v487, %v124
    %v500 = vmul.f32 %v488, %v124
    %v501 = vadd.f32 %v497, %v499
    %v502 = vadd.f32 %v498, %v500
    %v503 = vmul.f32 %v491, %v129
    %v504 = vmul.f32 %v492, %v129
    %v505 = vadd.f32 %v501, %v503
    %v506 = vadd.f32 %v502, %v504
    %v507 = vstv %s92
    %v508 = vadd.f32 %v505, %v507
    %v509 = vadd.f32 %v506, %v507
    %v510 = vmax.f32 %v508, 0.0
    %v511 = vmax.f32 %v509, 0.0
    %v512 = vmul.f32 %v479, %v139
    %v513 = vmul.f32 %v480, %v139
    %v514 = vmul.f32 %v483, %v142
    %v515 = vmul.f32 %v484, %v142
    %v516 = vadd.f32 %v512, %v514
    %v517 = vadd.f32 %v513, %v515
    %v518 = vmul.f32 %v487, %v147
    %v519 = vmul.f32 %v488, %v147
    %v520 = vadd.f32 %v516, %v518
    %v521 = vadd.f32 %v517, %v519
    %v522 = vmul.f32 %v491, %v152
    %v523 = vmul.f32 %v492, %v152
    %v524 = vadd.f32 %v520, %v522
    %v525 = vadd.f32 %v521, %v523
    %v526 = vstv %s93
    %v527 = vadd.f32 %v524, %v526
    %v528 = vadd.f32 %v525, %v526
    %v529 = vmax.f32 %v527, 0.0
    %v530 = vmax.f32 %v528, 0.0
    %v531 = vadd.f32 %v510, %v529
    %v532 = vadd.f32 %v511, %v530
    %v533 = vmul.f32 %v479, %v164
    %v534 = vmul.f32 %v480, %v164
    %v535 = vmul.f32 %v483, %v167
    %v536 = vmul.f32 %v484, %v167
    %v537 = vadd.f32 %v533, %v535
    %v538 = vadd.f32 %v534, %v536
    %v539 = vmul.f32 %v487, %v172
    %v540 = vmul.f32 %v488, %v172
    %v541 = vadd.f32 %v537, %v539
    %v542 = vadd.f32 %v538, %v540
    %v543 = vmul.f32 %v491, %v177
    %v544 = vmul.f32 %v492, %v177
    %v545 = vadd.f32 %v541, %v543
    %v546 = vadd.f32 %v542, %v544
    %v547 = vstv %s94
    %v548 = vadd.f32 %v545, %v547
    %v549 = vadd.f32 %v546, %v547
    %v550 = vmax.f32 %v548, 0.0
    %v551 = vmax.f32 %v549, 0.0
    %v552 = vadd.f32 %v531, %v550
    %v553 = vadd.f32 %v532, %v551
    %v554 = vmul.f32 %v479, %v189
    %v555 = vmul.f32 %v480, %v189
    %v556 = vmul.f32 %v483, %v192
    %v557 = vmul.f32 %v484, %v192
    %v558 = vadd.f32 %v554, %v556
    %v559 = vadd.f32 %v555, %v557
    %v560 = vmul.f32 %v487, %v197
    %v561 = vmul.f32 %v488, %v197
    %v562 = vadd.f32 %v558, %v560
    %v563 = vadd.f32 %v559, %v561
    %v564 = vmul.f32 %v491, %v202
    %v565 = vmul.f32 %v492, %v202
    %v566 = vadd.f32 %v562, %v564
    %v567 = vadd.f32 %v563, %v565
    %v568 = vstv %s95
    %v569 = vadd.f32 %v566, %v568
    %v570 = vadd.f32 %v567, %v568
    %v571 = vmax.f32 %v569, 0.0
    %v572 = vmax.f32 %v570, 0.0
    %v573 = vadd.f32 %v552, %v571
    %v574 = vadd.f32 %v553, %v572
    %v575 = vmul.f32 %v479, %v214
    %v576 = vmul.f32 %v480, %v214
    %v577 = vmul.f32 %v483, %v217
    %v578 = vmul.f32 %v484, %v217
    %v579 = vadd.f32 %v575, %v577
    %v580 = vadd.f32 %v576, %v578
    %v581 = vmul.f32 %v487, %v222
    %v582 = vmul.f32 %v488, %v222
    %v583 = vadd.f32 %v579, %v581
    %v584 = vadd.f32 %v580, %v582
    %v585 = vmul.f32 %v491, %v227
    %v586 = vmul.f32 %v492, %v227
    %v587 = vadd.f32 %v583, %v585
    %v588 = vadd.f32 %v584, %v586
    %v589 = vstv %s96
    %v590 = vadd.f32 %v587, %v589
    %v591 = vadd.f32 %v588, %v589
    %v592 = vmax.f32 %v590, 0.0
    %v593 = vmax.f32 %v591, 0.0
    %v594 = vadd.f32 %v573, %v592
    %v595 = vadd.f32 %v574, %v593
    %s596 = sadd.s32 0, 256
    %s597 = scalar_lea.vmem [#allocation2], %s596
    %v598 = vld [vmem:[%s597] sm:$0xff]
    %v599 = vld [vmem:[%s597 + $0x8] sm:$0xff]
    %s600 = sadd.s32 0, 272
    %s601 = scalar_lea.vmem [#allocation2], %s600
    %v602 = vld [vmem:[%s601] sm:$0xff]
    %v603 = vld [vmem:[%s601 + $0x8] sm:$0xff]
    %s604 = sadd.s32 0, 288
    %s605 = scalar_lea.vmem [#allocation2], %s604
    %v606 = vld [vmem:[%s605] sm:$0xff]
    %v607 = vld [vmem:[%s605 + $0x8] sm:$0xff]
    %s608 = sadd.s32 0, 304
    %s609 = scalar_lea.vmem [#allocation2], %s608
    %v610 = vld [vmem:[%s609] sm:$0xff]
    %v611 = vld [vmem:[%s609 + $0x8] sm:$0xff]
    %v612 = vmul.f32 %v598, %v116
    %v613 = vmul.f32 %v599, %v116
    %v614 = vmul.f32 %v602, %v119
    %v615 = vmul.f32 %v603, %v119
    %v616 = vadd.f32 %v612, %v614
    %v617 = vadd.f32 %v613, %v615
    %v618 = vmul.f32 %v606, %v124
    %v619 = vmul.f32 %v607, %v124
    %v620 = vadd.f32 %v616, %v618
    %v621 = vadd.f32 %v617, %v619
    %v622 = vmul.f32 %v610, %v129
    %v623 = vmul.f32 %v611, %v129
    %v624 = vadd.f32 %v620, %v622
    %v625 = vadd.f32 %v621, %v623
    %v626 = vstv %s97
    %v627 = vadd.f32 %v624, %v626
    %v628 = vadd.f32 %v625, %v626
    %v629 = vmax.f32 %v627, 0.0
    %v630 = vmax.f32 %v628, 0.0
    %v631 = vmul.f32 %v598, %v139
    %v632 = vmul.f32 %v599, %v139
    %v633 = vmul.f32 %v602, %v142
    %v634 = vmul.f32 %v603, %v142
    %v635 = vadd.f32 %v631, %v633
    %v636 = vadd.f32 %v632, %v634
    %v637 = vmul.f32 %v606, %v147
    %v638 = vmul.f32 %v607, %v147
    %v639 = vadd.f32 %v635, %v637
    %v640 = vadd.f32 %v636, %v638
    %v641 = vmul.f32 %v610, %v152
    %v642 = vmul.f32 %v611, %v152
    %v643 = vadd.f32 %v639, %v641
    %v644 = vadd.f32 %v640, %v642
    %v645 = vstv %s98
    %v646 = vadd.f32 %v643, %v645
    %v647 = vadd.f32 %v644, %v645
    %v648 = vmax.f32 %v646, 0.0
    %v649 = vmax.f32 %v647, 0.0
    %v650 = vadd.f32 %v629, %v648
    %v651 = vadd.f32 %v630, %v649
    %v652 = vmul.f32 %v598, %v164
    %v653 = vmul.f32 %v599, %v164
    %v654 = vmul.f32 %v602, %v167
    %v655 = vmul.f32 %v603, %v167
    %v656 = vadd.f32 %v652, %v654
    %v657 = vadd.f32 %v653, %v655
    %v658 = vmul.f32 %v606, %v172
    %v659 = vmul.f32 %v607, %v172
    %v660 = vadd.f32 %v656, %v658
    %v661 = vadd.f32 %v657, %v659
    %v662 = vmul.f32 %v610, %v177
    %v663 = vmul.f32 %v611, %v177
    %v664 = vadd.f32 %v660, %v662
    %v665 = vadd.f32 %v661, %v663
    %v666 = vstv %s99
    %v667 = vadd.f32 %v664, %v666
    %v668 = vadd.f32 %v665, %v666
    %v669 = vmax.f32 %v667, 0.0
    %v670 = vmax.f32 %v668, 0.0
    %v671 = vadd.f32 %v650, %v669
    %v672 = vadd.f32 %v651, %v670
    %v673 = vmul.f32 %v598, %v189
    %v674 = vmul.f32 %v599, %v189
    %v675 = vmul.f32 %v602, %v192
    %v676 = vmul.f32 %v603, %v192
    %v677 = vadd.f32 %v673, %v675
    %v678 = vadd.f32 %v674, %v676
    %v679 = vmul.f32 %v606, %v197
    %v680 = vmul.f32 %v607, %v197
    %v681 = vadd.f32 %v677, %v679
    %v682 = vadd.f32 %v678, %v680
    %v683 = vmul.f32 %v610, %v202
    %v684 = vmul.f32 %v611, %v202
    %v685 = vadd.f32 %v681, %v683
    %v686 = vadd.f32 %v682, %v684
    %v687 = vstv %s100
    %v688 = vadd.f32 %v685, %v687
    %v689 = vadd.f32 %v686, %v687
    %v690 = vmax.f32 %v688, 0.0
    %v691 = vmax.f32 %v689, 0.0
    %v692 = vadd.f32 %v671, %v690
    %v693 = vadd.f32 %v672, %v691
    %v694 = vmul.f32 %v598, %v214
    %v695 = vmul.f32 %v599, %v214
    %v696 = vmul.f32 %v602, %v217
    %v697 = vmul.f32 %v603, %v217
    %v698 = vadd.f32 %v694, %v696
    %v699 = vadd.f32 %v695, %v697
    %v700 = vmul.f32 %v606, %v222
    %v701 = vmul.f32 %v607, %v222
    %v702 = vadd.f32 %v698, %v700
    %v703 = vadd.f32 %v699, %v701
    %v704 = vmul.f32 %v610, %v227
    %v705 = vmul.f32 %v611, %v227
    %v706 = vadd.f32 %v702, %v704
    %v707 = vadd.f32 %v703, %v705
    %v708 = vstv %s101
    %v709 = vadd.f32 %v706, %v708
    %v710 = vadd.f32 %v707, %v708
    %v711 = vmax.f32 %v709, 0.0
    %v712 = vmax.f32 %v710, 0.0
    %v713 = vadd.f32 %v692, %v711
    %v714 = vadd.f32 %v693, %v712
    %vm715 = vcmp.gt.f32.partialorder %v237, -inf
    %vm716 = vcmp.gt.f32.partialorder %v238, -inf
    %v717 = vsel %vm715, %v237, -inf
    %v718 = vsel %vm716, %v238, -inf
    %vm719 = vcmp.gt.f32.partialorder %v356, %v717
    %vm720 = vcmp.gt.f32.partialorder %v357, %v718
    %vm721 = vcmp.gt.f32.partialorder %v356, -inf
    %vm722 = vcmp.gt.f32.partialorder %v357, -inf
    %v723 = vsel %vm719, %v356, %v717
    %v724 = vsel %vm720, %v357, %v718
    %v725 = vsel %vm719, 1, 0
    %v726 = vsel %vm720, 1, 0
    %v727 = vsel %vm721, %v356, -inf
    %v728 = vsel %vm722, %v357, -inf
    %v729 = vsel %vm719, %v717, %v727
    %v730 = vsel %vm720, %v718, %v728
    %v731 = vsel %vm721, 1, 0
    %v732 = vsel %vm722, 1, 0
    %v733 = vsel %vm719, 0, %v731
    %v734 = vsel %vm720, 0, %v732
    %vm735 = vcmp.gt.f32.partialorder %v475, %v723
    %vm736 = vcmp.gt.f32.partialorder %v476, %v724
    %vm737 = vcmp.gt.f32.partialorder %v475, %v729
    %vm738 = vcmp.gt.f32.partialorder %v476, %v730
    %vm739 = vcmp.gt.f32.partialorder %v475, -inf
    %vm740 = vcmp.gt.f32.partialorder %v476, -inf
    %v741 = vsel %vm735, %v475, %v723
    %v742 = vsel %vm736, %v476, %v724
    %v743 = vsel %vm735, 2, %v725
    %v744 = vsel %vm736, 2, %v726
    %v745 = vsel %vm737, %v475, %v729
    %v746 = vsel %vm738, %v476, %v730
    %v747 = vsel %vm735, %v723, %v745
    %v748 = vsel %vm736, %v724, %v746
    %v749 = vsel %vm737, 2, %v733
    %v750 = vsel %vm738, 2, %v734
    %v751 = vsel %vm735, %v725, %v749
    %v752 = vsel %vm736, %v726, %v750
    %v753 = vsel %vm739, %v475, -inf
    %v754 = vsel %vm740, %v476, -inf
    %v755 = vsel %vm737, %v729, %v753
    %v756 = vsel %vm738, %v730, %v754
    %v757 = vsel %vm739, 2, 0
    %v758 = vsel %vm740, 2, 0
    %v759 = vsel %vm737, %v733, %v757
    %v760 = vsel %vm738, %v734, %v758
    %vm761 = vcmp.gt.f32.partialorder %v594, %v741
    %vm762 = vcmp.gt.f32.partialorder %v595, %v742
    %vm763 = vcmp.gt.f32.partialorder %v594, %v747
    %vm764 = vcmp.gt.f32.partialorder %v595, %v748
    %vm765 = vcmp.gt.f32.partialorder %v594, %v755
    %vm766 = vcmp.gt.f32.partialorder %v595, %v756
    %v767 = vsel %vm761, %v594, %v741
    %v768 = vsel %vm762, %v595, %v742
    %v769 = vsel %vm761, 3, %v743
    %v770 = vsel %vm762, 3, %v744
    %v771 = vsel %vm763, %v594, %v747
    %v772 = vsel %vm764, %v595, %v748
    %v773 = vsel %vm761, %v741, %v771
    %v774 = vsel %vm762, %v742, %v772
    %v775 = vsel %vm763, 3, %v751
    %v776 = vsel %vm764, 3, %v752
    %v777 = vsel %vm761, %v743, %v775
    %v778 = vsel %vm762, %v744, %v776
    %v779 = vsel %vm765, %v594, %v755
    %v780 = vsel %vm766, %v595, %v756
    %v781 = vsel %vm763, %v747, %v779
    %v782 = vsel %vm764, %v748, %v780
    %v783 = vsel %vm765, 3, %v759
    %v784 = vsel %vm766, 3, %v760
    %v785 = vsel %vm763, %v751, %v783
    %v786 = vsel %vm764, %v752, %v784
    %vm787 = vcmp.gt.f32.partialorder %v713, %v767
    %vm788 = vcmp.gt.f32.partialorder %v714, %v768
    %vm789 = vcmp.gt.f32.partialorder %v713, %v773
    %vm790 = vcmp.gt.f32.partialorder %v714, %v774
    %vm791 = vcmp.gt.f32.partialorder %v713, %v781
    %vm792 = vcmp.gt.f32.partialorder %v714, %v782
    %v793 = vsel %vm787, %v713, %v767
    %v794 = vsel %vm788, %v714, %v768
    %v795 = vsel %vm787, 4, %v769
    %v796 = vsel %vm788, 4, %v770
    %v797 = vsel %vm789, %v713, %v773
    %v798 = vsel %vm790, %v714, %v774
    %v799 = vsel %vm787, %v767, %v797
    %v800 = vsel %vm788, %v768, %v798
    %v801 = vsel %vm789, 4, %v777
    %v802 = vsel %vm790, 4, %v778
    %v803 = vsel %vm787, %v769, %v801
    %v804 = vsel %vm788, %v770, %v802
    %v805 = vsel %vm791, %v713, %v781
    %v806 = vsel %vm792, %v714, %v782
    %v807 = vsel %vm789, %v773, %v805
    %v808 = vsel %vm790, %v774, %v806
    %v809 = vsel %vm791, 4, %v785
    %v810 = vsel %vm792, 4, %v786
    %v811 = vsel %vm789, %v777, %v809
    %v812 = vsel %vm790, %v778, %v810
    %813 = vst [vmem:[#allocation9] sm:$0xff] %v793
    %814 = vst [vmem:[#allocation9 + $0x8] sm:$0xff] %v794
    %s815 = scalar_lea.vmem [#allocation9], %s104
    %816 = vst [vmem:[%s815] sm:$0xff] %v799
    %817 = vst [vmem:[%s815 + $0x8] sm:$0xff] %v800
    %s818 = scalar_lea.vmem [#allocation9], %s108
    %819 = vst [vmem:[%s818] sm:$0xff] %v807
    %820 = vst [vmem:[%s818 + $0x8] sm:$0xff] %v808
    %821 = vst [vmem:[#allocation10] sm:$0xff] %v795
    %822 = vst [vmem:[#allocation10 + $0x8] sm:$0xff] %v796
    %s823 = scalar_lea.vmem [#allocation10], %s104
    %824 = vst [vmem:[%s823] sm:$0xff] %v803
    %825 = vst [vmem:[%s823 + $0x8] sm:$0xff] %v804
    %s826 = scalar_lea.vmem [#allocation10], %s108
    %827 = vst [vmem:[%s826] sm:$0xff] %v811
    %828 = vst [vmem:[%s826 + $0x8] sm:$0xff] %v812
    // Predicated region
    $region26: #{tpu_custom_call.1} parent=1 // pred_check
      _
    $region27: #{tpu_custom_call.1} parent=1 // pred_check_branch
      %830 = sbr.rel (0) target = $region29
    $region28: #{tpu_custom_call.1} parent=1 // pred_region
      %s832 = ssub.s32 768, 768
      %833 = vsyncadd [#allocation4], %s832
      %s834 = sshll.u32 [#allocation9], 4
      %s835 = int_to_ptr.vmem [resolvable:$true] %s834
      %840 = dma.vmem_to_hbm [thread:$0]  %s835, 768, %s3, [#allocation4], 128, 128, 8
    $region29: #{tpu_custom_call.1} parent=1 // pred_fallthru
      _
    // Predicated region
    $region30: #{tpu_custom_call.1} parent=1 // pred_check
      _
    $region31: #{tpu_custom_call.1} parent=1 // pred_check_branch
      %842 = sbr.rel (0) target = $region33
    $region32: #{tpu_custom_call.1} parent=1 // pred_region
      %s844 = ssub.s32 768, 768
      %845 = vsyncadd [#allocation11], %s844
      %s846 = sshll.u32 [#allocation10], 4
      %s847 = int_to_ptr.vmem [resolvable:$true] %s846
      %852 = dma.vmem_to_hbm [thread:$0]  %s847, 768, %s4, [#allocation11], 128, 128, 8
    $region33: #{tpu_custom_call.1} parent=1 // pred_fallthru
      _
    // Predicated region
    $region34: #{tpu_custom_call.1} parent=1 // pred_check
      _
    $region35: #{tpu_custom_call.1} parent=1 // pred_check_branch
      %854 = sbr.rel (0) target = $region37
    $region36: #{tpu_custom_call.1} parent=1 // pred_region
      %855 = dma.done [#allocation4], 768
    $region37: #{tpu_custom_call.1} parent=1 // pred_fallthru
      _
    // Predicated region
    $region38: #{tpu_custom_call.1} parent=1 // pred_check
      _
    $region39: #{tpu_custom_call.1} parent=1 // pred_check_branch
      %857 = sbr.rel (0) target = $region41
    $region40: #{tpu_custom_call.1} parent=1 // pred_region
      %858 = dma.done [#allocation11], 768
    $region41: #{tpu_custom_call.1} parent=1 // pred_fallthru
      _
    %859 = vsyncpa [#allocation3], 1
    %860 = vsyncpa [#allocation4], 1
    %861 = vsyncpa [#allocation11], 1
    %862 = vsyncpa [#allocation5], 1
    %863 = vsyncpa [#allocation8], 1

</llo_original>
